<compile_context>
chip_gen: v7x
topology: tpu7x:2x2x1
jax: 0.10.0
libtpu: 0.0.40
codegen_flags: <defaults>
</compile_context>

<pallas_src>
import jax
import jax.numpy as jnp
import numpy as np
from jax.experimental import pallas as pl
from jax.experimental.pallas import tpu as pltpu


# ----------------------------------------------------------------------------
# Fused kernel: one K=2304 MXU matmul + BatchNorm (training-mode batch stats,
# biased variance, eps=1e-5, affine) + ReLU, per 128-wide Cout tile.
#   p_ref    : (M, 9*Cin)      bf16   im2col patches, M = N*H*W (resident across grid)
#   w_ref    : (9*Cin, TCout)  bf16   conv weights for this Cout tile
#   g_ref    : (1, TCout)      f32    BN gamma
#   beta_ref : (1, TCout)      f32    BN beta
#   o_ref    : (M, TCout)      f32    output tile (lane-dense, unmasked stores)
# ----------------------------------------------------------------------------
def fused_conv_bn_relu_kernel(p_ref, w_ref, g_ref, beta_ref, o_ref):
    # Single long-K matmul; f32 accumulation inside the MXU result path.
    y = jnp.dot(p_ref[...], w_ref[...], preferred_element_type=jnp.float32)

    m = y.shape[0]
    inv_m = 1.0 / m

    # One-pass BN statistics over N,H,W (= row axis): var = E[y^2] - mean^2.
    s1 = jnp.sum(y, axis=0, keepdims=True)
    s2 = jnp.sum(y * y, axis=0, keepdims=True)
    mean = s1 * inv_m
    var = s2 * inv_m - mean * mean

    # Fold affine: out = max(y * scale + shift, 0)
    scale = g_ref[...] * jax.lax.rsqrt(var + 1e-5)
    shift = beta_ref[...] - mean * scale
    o_ref[...] = jnp.maximum(y * scale + shift, 0.0)


# ----------------------------------------------------------------------------
# Wrapper (PyTorch NCHW convention at the boundary)
# ----------------------------------------------------------------------------
def block_of_dmt2(x_nchw, conv_w, conv_b, bn_gamma, bn_beta):
    """x_nchw: (N, Cin, H, W); conv_w: (Cout, Cin, 3, 3) PyTorch OIHW layout.

    conv_b is accepted for API parity but unused: train-mode BatchNorm subtracts the
    per-channel mean over the same rows, so the output is invariant to the conv bias.
    """
    del conv_b
    N, Cin, H, W = x_nchw.shape
    Cout = conv_w.shape[0]
    M = N * H * W
    K = 9 * Cin
    TCOUT = 128                      # exactly one 128-lane tile per grid step
    n_tiles = Cout // TCOUT

    # NCHW -> NHWC (channels on the lane axis), bf16 early (halves intermediate
    # traffic), pad spatially by 1 ("same").
    x = jnp.transpose(x_nchw, (0, 2, 3, 1)).astype(jnp.bfloat16)
    xp = jnp.pad(x, ((0, 0), (1, 1), (1, 1), (0, 0)))            # (N, H+2, W+2, Cin)

    # im2col in ONE concat along channels -> (M, 9*Cin), tap-major then Cin.
    patches = jnp.concatenate(
        [xp[:, ky:ky + H, kx:kx + W, :] for ky in range(3) for kx in range(3)],
        axis=-1).reshape(M, K)                                    # bf16 (M, 2304)

    # Weights OIHW -> (ky, kx, Cin, Cout) -> (9*Cin, Cout), matching patch K order.
    w_flat = (jnp.transpose(conv_w, (2, 3, 1, 0))
              .reshape(K, Cout).astype(jnp.bfloat16))

    g2 = bn_gamma.reshape(1, Cout).astype(jnp.float32)
    be2 = bn_beta.reshape(1, Cout).astype(jnp.float32)

    out_slab = pl.pallas_call(
        fused_conv_bn_relu_kernel,
        out_shape=jax.ShapeDtypeStruct((M, Cout), jnp.float32),
        grid_spec=pltpu.PrefetchScalarGridSpec(
            num_scalar_prefetch=0,
            grid=(n_tiles,),                                     # 2 tiles over Cout
            in_specs=[
                pl.BlockSpec((M, K), lambda j: (0, 0)),          # patches: resident
                pl.BlockSpec((K, TCOUT), lambda j: (0, j)),      # weights: per tile
                pl.BlockSpec((1, TCOUT), lambda j: (0, j)),
                pl.BlockSpec((1, TCOUT), lambda j: (0, j)),
            ],
            out_specs=pl.BlockSpec((M, TCOUT), lambda j: (0, j)),
        ),
        compiler_params=pltpu.CompilerParams(
            dimension_semantics=("parallel",)),                  # v7x: one tile per TC
    )(patches, w_flat, g2, be2)

    # Lane-dense (M, Cout) slab -> NCHW for the PyTorch-convention caller.
    return jnp.transpose(out_slab.reshape(N, H, W, Cout), (0, 3, 1, 2))

# TODO(synk): PyTorch BatchNorm2d training mode also updates running_mean/running_var;
# this fused forward does not compute/return them (per-channel mean/var are available
# in-kernel if needed later).


# ----------------------------------------------------------------------------
# Pure-JAX f32 reference (module semantics)
# ----------------------------------------------------------------------------
def reference(x_nchw, conv_w, conv_b, bn_gamma, bn_beta):
    y = jax.lax.conv_general_dilated(
        x_nchw, conv_w, window_strides=(1, 1), padding="SAME",
        dimension_numbers=("NCHW", "OIHW", "NCHW"),
        precision=jax.lax.Precision.HIGHEST)
    y = y + conv_b[None, :, None, None]
    mean = jnp.mean(y, axis=(0, 2, 3), keepdims=True)
    var = jnp.mean((y - mean) ** 2, axis=(0, 2, 3), keepdims=True)
    y_hat = (y - mean) / jnp.sqrt(var + 1e-5)
    out = bn_gamma[None, :, None, None] * y_hat + bn_beta[None, :, None, None]
    return jnp.maximum(out, 0.0)


if __name__ == "__main__":
    # Channels are fixed at 256 by the module; keep batch / spatial small.
    N, C, H, W = 2, 256, 8, 8
    Cout = 256

    key = jax.random.PRNGKey(0)
    k_x, k_w, k_b, k_g, k_be = jax.random.split(key, 5)

    x = jax.random.normal(k_x, (N, C, H, W), jnp.float32)
    conv_w = jax.random.normal(k_w, (Cout, C, 3, 3), jnp.float32) * 0.05
    conv_b = jax.random.normal(k_b, (Cout,), jnp.float32) * 0.1
    bn_gamma = 1.0 + 0.1 * jax.random.normal(k_g, (Cout,), jnp.float32)
    bn_beta = 0.1 * jax.random.normal(k_be, (Cout,), jnp.float32)

    out = jax.block_until_ready(block_of_dmt2(x, conv_w, conv_b, bn_gamma, bn_beta))
    ref = jax.block_until_ready(reference(x, conv_w, conv_b, bn_gamma, bn_beta))

    # Tolerance: the kernel feeds bf16 operands to the MXU (f32 accumulation) and the
    # input itself is cast to bf16 for the im2col slab, so vs. the full-f32 reference
    # the per-element error after BN normalization is ~1e-2 worst case; 3e-2 leaves
    # a comfortable margin over the whole tensor.
    np.testing.assert_allclose(np.asarray(out), np.asarray(ref),
                               rtol=3e-2, atol=3e-2)

    print("KERNEL_OK")
</pallas_src>

<mosaic_0001>
module attributes {stable_mosaic.version = 11 : i64} {
  func.func @fused_conv_bn_relu_kernel(%arg0: i32, %arg1: memref<128x2304xbf16, #tpu.memory_space<vmem>>, %arg2: memref<2304x128xbf16, #tpu.memory_space<vmem>>, %arg3: memref<1x128xf32, #tpu.memory_space<vmem>>, %arg4: memref<1x128xf32, #tpu.memory_space<vmem>>, %arg5: memref<128x128xf32, #tpu.memory_space<vmem>>) attributes {dimension_semantics = [#tpu.dimension_semantics<parallel>], iteration_bounds = array<i64: 2>, scalar_prefetch = 0 : i64, scratch_operands = 0 : i64, tpu.core_type = #tpu.core_type<tc>, window_params = [{pipeline_mode = #tpu.pipeline_mode<synchronous>, transform_indices = @transform_0, window_bounds = array<i64: 128, 2304>}, {transform_indices = @transform_1, window_bounds = array<i64: 2304, 128>}, {transform_indices = @transform_2, window_bounds = array<i64: 1, 128>}, {transform_indices = @transform_3, window_bounds = array<i64: 1, 128>}, {transform_indices = @transform_4, window_bounds = array<i64: 128, 128>}]} {
    %c0 = arith.constant 0 : index
    %c0_0 = arith.constant 0 : index
    %0 = vector.load %arg1[%c0, %c0_0] : memref<128x2304xbf16, #tpu.memory_space<vmem>>, vector<128x2304xbf16>
    %c0_1 = arith.constant 0 : index
    %c0_2 = arith.constant 0 : index
    %1 = vector.load %arg2[%c0_1, %c0_2] : memref<2304x128xbf16, #tpu.memory_space<vmem>>, vector<2304x128xbf16>
    %cst = arith.constant dense<0.000000e+00> : vector<128x128xf32>
    %2 = tpu.matmul %0, %1, %cst {dimension_numbers = #tpu.dot_dimension_numbers<[1], [0], [0], [1], [0, 0, 1, 1], [], []>} : vector<128x2304xbf16>, vector<2304x128xbf16>, vector<128x128xf32> -> vector<128x128xf32>
    %cst_3 = arith.constant dense<0.000000e+00> : vector<128xf32>
    %3 = vector.multi_reduction <add>, %2, %cst_3 [0] : vector<128x128xf32> to vector<128xf32>
    %4 = vector.shape_cast %3 : vector<128xf32> to vector<1x128xf32>
    %5 = arith.mulf %2, %2 : vector<128x128xf32>
    %cst_4 = arith.constant dense<0.000000e+00> : vector<128xf32>
    %6 = vector.multi_reduction <add>, %5, %cst_4 [0] : vector<128x128xf32> to vector<128xf32>
    %7 = vector.shape_cast %6 : vector<128xf32> to vector<1x128xf32>
    %cst_5 = arith.constant 7.812500e-03 : f32
    %8 = vector.broadcast %cst_5 : f32 to vector<1x128xf32>
    %9 = arith.mulf %4, %8 : vector<1x128xf32>
    %cst_6 = arith.constant 7.812500e-03 : f32
    %10 = vector.broadcast %cst_6 : f32 to vector<1x128xf32>
    %11 = arith.mulf %7, %10 : vector<1x128xf32>
    %12 = arith.mulf %9, %9 : vector<1x128xf32>
    %13 = arith.subf %11, %12 : vector<1x128xf32>
    %c0_7 = arith.constant 0 : index
    %c0_8 = arith.constant 0 : index
    %14 = vector.load %arg3[%c0_7, %c0_8] : memref<1x128xf32, #tpu.memory_space<vmem>>, vector<1x128xf32>
    %cst_9 = arith.constant 9.99999974E-6 : f32
    %15 = vector.broadcast %cst_9 : f32 to vector<1x128xf32>
    %16 = arith.addf %13, %15 : vector<1x128xf32>
    %17 = math.rsqrt %16 : vector<1x128xf32>
    %18 = arith.mulf %14, %17 : vector<1x128xf32>
    %c0_10 = arith.constant 0 : index
    %c0_11 = arith.constant 0 : index
    %19 = vector.load %arg4[%c0_10, %c0_11] : memref<1x128xf32, #tpu.memory_space<vmem>>, vector<1x128xf32>
    %20 = arith.mulf %9, %18 : vector<1x128xf32>
    %21 = arith.subf %19, %20 : vector<1x128xf32>
    %22 = vector.broadcast %18 : vector<1x128xf32> to vector<128x128xf32>
    %23 = arith.mulf %2, %22 : vector<128x128xf32>
    %24 = vector.broadcast %21 : vector<1x128xf32> to vector<128x128xf32>
    %25 = arith.addf %23, %24 : vector<128x128xf32>
    %cst_12 = arith.constant 0.000000e+00 : f32
    %26 = vector.broadcast %cst_12 : f32 to vector<128x128xf32>
    %27 = arith.maximumf %25, %26 : vector<128x128xf32>
    %c0_13 = arith.constant 0 : index
    %c0_14 = arith.constant 0 : index
    %28 = vector.load %arg5[%c0_13, %c0_14] : memref<128x128xf32, #tpu.memory_space<vmem>>, vector<128x128xf32>
    tpu.vector_store %arg5[%c0_13, %c0_14], %27 {strides = array<i32>} : memref<128x128xf32, #tpu.memory_space<vmem>>, vector<128x128xf32>,
    return
  }
  func.func @transform_0(%arg0: i32) -> (i32, i32) {
    %c0_i32 = arith.constant 0 : i32
    %c0_i32_0 = arith.constant 0 : i32
    %c0_i32_1 = arith.constant 0 : i32
    return %c0_i32, %c0_i32_0 : i32, i32
  }
  func.func @transform_1(%arg0: i32) -> (i32, i32) {
    %c0_i32 = arith.constant 0 : i32
    %c0_i32_0 = arith.constant 0 : i32
    return %c0_i32, %arg0 : i32, i32
  }
  func.func @transform_2(%arg0: i32) -> (i32, i32) {
    %c0_i32 = arith.constant 0 : i32
    %c0_i32_0 = arith.constant 0 : i32
    return %c0_i32, %arg0 : i32, i32
  }
  func.func @transform_3(%arg0: i32) -> (i32, i32) {
    %c0_i32 = arith.constant 0 : i32
    %c0_i32_0 = arith.constant 0 : i32
    return %c0_i32, %arg0 : i32, i32
  }
  func.func @transform_4(%arg0: i32) -> (i32, i32) {
    %c0_i32 = arith.constant 0 : i32
    %c0_i32_0 = arith.constant 0 : i32
    return %c0_i32, %arg0 : i32, i32
  }
}

</mosaic_0001>

<llo_original>
// kernel: tpu_custom_call.1
$region0: #{tpu_custom_call.1}
  #allocation0 [shape = 'u32[]', space=smem, size = 0x4, offset = 0x4, fixed_abs, tag = 'smem constant byte address 0x4 - core index']
  #allocation1 [shape = 'u32[144,128]{1,0:T(1,128)}', space=vmem, size = 0x12000, scoped, tag = 'internal scratch']
  %s0 = inlined_call_operand.hbm [shape: bf16[128,2304], index: 0, kind: input, shape index: {}]
  %s1 = inlined_call_operand.hbm [shape: bf16[2304,256], index: 1, kind: input, shape index: {}]
  %s2 = inlined_call_operand.hbm [shape: f32[1,256], index: 2, kind: input, shape index: {}]
  %s3 = inlined_call_operand.hbm [shape: f32[1,256], index: 3, kind: input, shape index: {}]
  %s4 = inlined_call_operand.hbm [shape: f32[128,256], index: 4, kind: output, shape index: {}]
  %s5 = sld [smem:[#allocation0]]
  $region65: #{tpu_custom_call.1} parent=0
    _
  %s7 = ssub.s32 1, %s5
  %s8 = scalar_select 0, %s7, %s5
  $region1: #{tpu_custom_call.1} parent=0
    #allocation2 [shape = 'u8[589824]{0}', space=vmem, size = 0x90000, scoped, tag = 'input window, operand 0, single buffered']
    #allocation3 [shape = 's32[2]{0}', space=sflag, size = 0x8, scoped, tag = 'scoped memory for tpu_custom_call.1']
    #allocation4 [shape = 's32[2]{0}', space=sflag, size = 0x8, scoped, tag = 'scoped memory for tpu_custom_call.1']
    #allocation5 [shape = 'u8[1179648]{0}', space=vmem, size = 0x120000, scoped, tag = 'input window, operand 1']
    #allocation6 [shape = 's32[2]{0}', space=sflag, size = 0x8, scoped, tag = 'scoped memory for tpu_custom_call.1']
    #allocation7 [shape = 'u8[1024]{0}', space=vmem, size = 0x400, scoped, tag = 'input window, operand 2']
    #allocation8 [shape = 'u8[1024]{0}', space=vmem, size = 0x400, scoped, tag = 'input window, operand 3']
    #allocation9 [shape = 's32[2]{0}', space=sflag, size = 0x8, scoped, tag = 'scoped memory for tpu_custom_call.1']
    #allocation10 [shape = 'u8[131072]{0}', space=vmem, size = 0x20000, scoped, tag = 'output window, operand 0']
    %9 = vsyncpa [#allocation3], 0
    %10 = vsyncpa [#allocation6], 0
    %s11 = scalar_lea.sflag [#allocation6], 1
    %12 = vsyncpa %s11, 0
    %13 = vsyncpa [#allocation9], 0
    %s14 = scalar_lea.sflag [#allocation9], 1
    %15 = vsyncpa %s14, 0
    %16 = vsyncpa [#allocation4], 0
    %s17 = scalar_lea.sflag [#allocation4], 1
    %18 = vsyncpa %s17, 0
    loop: start=0, step=1, limit=4
    $region2: #{tpu_custom_call.1} parent=1 // loop_pre_header
      _
    $region3: #{tpu_custom_call.1} parent=1 // loop_header
      %s20 = sphi 0, %s24
      %p21 = scmp.ge.s32.totalorder %s20, 4
      %s28 = sphi 0, %s28
      %s30 = sphi 0, %s28
      %s31 = sphi 0, %s30
      %s45 = sphi 0, %s31
      %s51 = sphi 0, %s53
      %s54 = sphi 0, %s51
      %s55 = sphi 0, %s54
      %s71 = sphi 0, %s55
      %s77 = sphi 0, %s79
      %s80 = sphi 0, %s77
      %s81 = sphi 0, %s80
      %s97 = sphi 0, %s81
      %s103 = sphi 0, %s105
      %s106 = sphi 0, %s103
      %s107 = sphi 0, %s106
      %s123 = sphi 0, %s107
      %s129 = sphi 0, %s131
      %s132 = sphi 0, %s129
      %s133 = sphi 0, %s132
      %s149 = sphi 0, %s133
    $region4: #{tpu_custom_call.1} parent=1 // loop_header_branch
      %23 = sbr.rel (%p21) target = $region8
    $region5: #{tpu_custom_call.1} parent=1 // loop_body
      %s25 = ssub.s32 %s20, 1
      %s26 = ssub.s32 %s20, 2
      %s27 = sadd.s32 %s20, 1
      %s29 = sadd.s32 %s28, 1
      %p32 = scmp.eq.s32.totalorder %s20, 1
      %p33 = scmp.ne.s32.totalorder %s28, %s30
      %p34 = scmp.eq.s32.totalorder %s20, 0
      %p35 = por %p33, %p34
      %p36 = scmp.ne.s32.totalorder %s28, %s30
      %p37 = scmp.eq.s32.totalorder %s25, 1
      %p38 = por %p36, %p37
      %p39 = scmp.ne.s32.totalorder %s30, %s31
      %p40 = scmp.eq.s32.totalorder %s25, 0
      %p41 = por %p39, %p40
      %p42 = scmp.ne.s32.totalorder %s30, %s31
      %p43 = scmp.eq.s32.totalorder %s26, 1
      %p44 = por %p42, %p43
      %p46 = scmp.ne.s32.totalorder %s31, %s45
      %p47 = scmp.eq.s32.totalorder %s26, 0
      %p48 = por %p46, %p47
      %s49 = ssub.s32 %s20, %s27
      %p50 = scmp.eq.s32.totalorder %s49, 0
      %s52 = sadd.s32 %s51, 1
      %s53 = scalar_select %p50, %s51, %s52
      %p56 = pneg %p50
      %p57 = scmp.eq.s32.totalorder %s20, 1
      %p58 = por %p56, %p57
      %p59 = scmp.ne.s32.totalorder %s51, %s54
      %p60 = scmp.eq.s32.totalorder %s20, 0
      %p61 = por %p59, %p60
      %p62 = scmp.ne.s32.totalorder %s51, %s54
      %p63 = scmp.eq.s32.totalorder %s25, 1
      %p64 = por %p62, %p63
      %p65 = scmp.ne.s32.totalorder %s54, %s55
      %p66 = scmp.eq.s32.totalorder %s25, 0
      %p67 = por %p65, %p66
      %p68 = scmp.ne.s32.totalorder %s54, %s55
      %p69 = scmp.eq.s32.totalorder %s26, 1
      %p70 = por %p68, %p69
      %p72 = scmp.ne.s32.totalorder %s55, %s71
      %p73 = scmp.eq.s32.totalorder %s26, 0
      %p74 = por %p72, %p73
      %s75 = ssub.s32 %s20, %s27
      %p76 = scmp.eq.s32.totalorder %s75, 0
      %s78 = sadd.s32 %s77, 1
      %s79 = scalar_select %p76, %s77, %s78
      %p82 = pneg %p76
      %p83 = scmp.eq.s32.totalorder %s20, 1
      %p84 = por %p82, %p83
      %p85 = scmp.ne.s32.totalorder %s77, %s80
      %p86 = scmp.eq.s32.totalorder %s20, 0
      %p87 = por %p85, %p86
      %p88 = scmp.ne.s32.totalorder %s77, %s80
      %p89 = scmp.eq.s32.totalorder %s25, 1
      %p90 = por %p88, %p89
      %p91 = scmp.ne.s32.totalorder %s80, %s81
      %p92 = scmp.eq.s32.totalorder %s25, 0
      %p93 = por %p91, %p92
      %p94 = scmp.ne.s32.totalorder %s80, %s81
      %p95 = scmp.eq.s32.totalorder %s26, 1
      %p96 = por %p94, %p95
      %p98 = scmp.ne.s32.totalorder %s81, %s97
      %p99 = scmp.eq.s32.totalorder %s26, 0
      %p100 = por %p98, %p99
      %s101 = ssub.s32 %s20, %s27
      %p102 = scmp.eq.s32.totalorder %s101, 0
      %s104 = sadd.s32 %s103, 1
      %s105 = scalar_select %p102, %s103, %s104
      %p108 = pneg %p102
      %p109 = scmp.eq.s32.totalorder %s20, 1
      %p110 = por %p108, %p109
      %p111 = scmp.ne.s32.totalorder %s103, %s106
      %p112 = scmp.eq.s32.totalorder %s20, 0
      %p113 = por %p111, %p112
      %p114 = scmp.ne.s32.totalorder %s103, %s106
      %p115 = scmp.eq.s32.totalorder %s25, 1
      %p116 = por %p114, %p115
      %p117 = scmp.ne.s32.totalorder %s106, %s107
      %p118 = scmp.eq.s32.totalorder %s25, 0
      %p119 = por %p117, %p118
      %p120 = scmp.ne.s32.totalorder %s106, %s107
      %p121 = scmp.eq.s32.totalorder %s26, 1
      %p122 = por %p120, %p121
      %p124 = scmp.ne.s32.totalorder %s107, %s123
      %p125 = scmp.eq.s32.totalorder %s26, 0
      %p126 = por %p124, %p125
      %s127 = ssub.s32 %s20, %s27
      %p128 = scmp.eq.s32.totalorder %s127, 0
      %s130 = sadd.s32 %s129, 1
      %s131 = scalar_select %p128, %s129, %s130
      %p134 = pneg %p128
      %p135 = scmp.eq.s32.totalorder %s20, 1
      %p136 = por %p134, %p135
      %p137 = scmp.ne.s32.totalorder %s129, %s132
      %p138 = scmp.eq.s32.totalorder %s20, 0
      %p139 = por %p137, %p138
      %p140 = scmp.ne.s32.totalorder %s129, %s132
      %p141 = scmp.eq.s32.totalorder %s25, 1
      %p142 = por %p140, %p141
      %p143 = scmp.ne.s32.totalorder %s132, %s133
      %p144 = scmp.eq.s32.totalorder %s25, 0
      %p145 = por %p143, %p144
      %p146 = scmp.ne.s32.totalorder %s132, %s133
      %p147 = scmp.eq.s32.totalorder %s26, 1
      %p148 = por %p146, %p147
      %p150 = scmp.ne.s32.totalorder %s133, %s149
      %p151 = scmp.eq.s32.totalorder %s26, 0
      %p152 = por %p150, %p151
      %p153 = scmp.le.s32.totalorder 1, %s20
      %p154 = scmp.lt.s32.totalorder %s20, 3
      %p155 = pnand %p153, %p154
      %p156 = pneg %p155
      // Predicated region
      $region9: #{tpu_custom_call.1} parent=5 // pred_check
        _
      $region10: #{tpu_custom_call.1} parent=5 // pred_check_branch
        %158 = sbr.rel (%p155) target = $region12
      $region11: #{tpu_custom_call.1} parent=5 // pred_region
        %s159 = ssub.s32 %s20, 1
        // Predicated region
        $region13: #{tpu_custom_call.1} parent=11 // pred_check
          %p160 = pneg %p41
        $region14: #{tpu_custom_call.1} parent=11 // pred_check_branch
          %162 = sbr.rel (%p160) target = $region16
        $region15: #{tpu_custom_call.1} parent=11 // pred_region
          %s164 = ssub.s32 18432, 18432
          %165 = vsyncadd [#allocation3], %s164
          %s166 = sshll.u32 [#allocation2], 4
          %s167 = int_to_ptr.vmem [resolvable:$true] %s166
          %172 = dma.hbm_to_vmem [thread:$0]  %s0, 18432, %s167, [#allocation3], 1152, 1152, 72
        $region16: #{tpu_custom_call.1} parent=11 // pred_fallthru
          _
      $region12: #{tpu_custom_call.1} parent=5 // pred_fallthru
        _
      %p173 = scmp.lt.s32.totalorder %s20, 2
      // Predicated region
      $region17: #{tpu_custom_call.1} parent=5 // pred_check
        %p174 = pneg %p173
      $region18: #{tpu_custom_call.1} parent=5 // pred_check_branch
        %176 = sbr.rel (%p174) target = $region20
      $region19: #{tpu_custom_call.1} parent=5 // pred_region
        // Predicated region
        $region21: #{tpu_custom_call.1} parent=19 // pred_check
          %p177 = pneg %p61
        $region22: #{tpu_custom_call.1} parent=19 // pred_check_branch
          %179 = sbr.rel (%p177) target = $region24
        $region23: #{tpu_custom_call.1} parent=19 // pred_region
          %s180 = sand.u32 %s20, 1
          %s181 = scalar_lea.sflag [#allocation6], %s180
          %s182 = sand.u32 %s51, 1
          %s183 = smul.addr %s182, 1152
          %s184 = scalar_lea.vmem [#allocation5], %s183
          %s186 = ssub.s32 18432, 18432
          %187 = vsyncadd %s181, %s186
          %s188 = smul.addr %s20, 64
          %s189 = scalar_lea.hbm %s1, %s188
          %s190 = sshll.u32 %s184, 4
          %s191 = int_to_ptr.vmem [resolvable:$true] %s190
          %196 = dma.hbm_to_vmem [thread:$0]  %s189, 18432, %s191, %s181, 128, 64, 4
        $region24: #{tpu_custom_call.1} parent=19 // pred_fallthru
          _
        // Predicated region
        $region25: #{tpu_custom_call.1} parent=19 // pred_check
          %p197 = pneg %p87
        $region26: #{tpu_custom_call.1} parent=19 // pred_check_branch
          %199 = sbr.rel (%p197) target = $region28
        $region27: #{tpu_custom_call.1} parent=19 // pred_region
          %s200 = sand.u32 %s20, 1
          %s201 = scalar_lea.sflag [#allocation6], %s200
          %s202 = sand.u32 %s77, 1
          %s203 = scalar_lea.vmem [#allocation7], %s202
          %s205 = ssub.s32 16, 16
          %206 = vsyncadd %s201, %s205
          %s207 = smul.addr %s20, 16
          %s208 = scalar_lea.hbm %s2, %s207
          %s210 = sshll.u32 %s203, 4
          %s211 = int_to_ptr.vmem [resolvable:$true] %s210
          %213 = dma.hbm_to_vmem [thread:$0]  %s208, 16, %s211, %s201
        $region28: #{tpu_custom_call.1} parent=19 // pred_fallthru
          _
        // Predicated region
        $region29: #{tpu_custom_call.1} parent=19 // pred_check
          %p214 = pneg %p113
        $region30: #{tpu_custom_call.1} parent=19 // pred_check_branch
          %216 = sbr.rel (%p214) target = $region32
        $region31: #{tpu_custom_call.1} parent=19 // pred_region
          %s217 = sand.u32 %s103, 1
          %s218 = scalar_lea.sflag [#allocation9], %s217
          %s219 = sand.u32 %s103, 1
          %s220 = scalar_lea.vmem [#allocation8], %s219
          %s222 = ssub.s32 16, 16
          %223 = vsyncadd %s218, %s222
          %s224 = smul.addr %s20, 16
          %s225 = scalar_lea.hbm %s3, %s224
          %s227 = sshll.u32 %s220, 4
          %s228 = int_to_ptr.vmem [resolvable:$true] %s227
          %230 = dma.hbm_to_vmem [thread:$0]  %s225, 16, %s228, %s218
        $region32: #{tpu_custom_call.1} parent=19 // pred_fallthru
          _
      $region20: #{tpu_custom_call.1} parent=5 // pred_fallthru
        _
      %p231 = scmp.le.s32.totalorder 1, %s20
      %p232 = scmp.lt.s32.totalorder %s20, 3
      %p233 = pnand %p231, %p232
      %p234 = pneg %p233
      // Predicated region
      $region33: #{tpu_custom_call.1} parent=5 // pred_check
        _
      $region34: #{tpu_custom_call.1} parent=5 // pred_check_branch
        %236 = sbr.rel (%p233) target = $region36
      $region35: #{tpu_custom_call.1} parent=5 // pred_region
        %s237 = ssub.s32 %s20, 1
        // Predicated region
        $region37: #{tpu_custom_call.1} parent=35 // pred_check
          %p238 = pneg %p41
        $region38: #{tpu_custom_call.1} parent=35 // pred_check_branch
          %240 = sbr.rel (%p238) target = $region40
        $region39: #{tpu_custom_call.1} parent=35 // pred_region
          %241 = dma.done [#allocation3], 18432
        $region40: #{tpu_custom_call.1} parent=35 // pred_fallthru
          _
        %s242 = sand.u32 %s25, 1
        %s243 = scalar_lea.sflag [#allocation6], %s242
        %s244 = sand.u32 %s54, 1
        %s245 = smul.addr %s244, 1152
        %s246 = scalar_lea.vmem [#allocation5], %s245
        // Predicated region
        $region41: #{tpu_custom_call.1} parent=35 // pred_check
          %p247 = pneg %p67
        $region42: #{tpu_custom_call.1} parent=35 // pred_check_branch
          %249 = sbr.rel (%p247) target = $region44
        $region43: #{tpu_custom_call.1} parent=35 // pred_region
          %250 = dma.done %s243, 18432
        $region44: #{tpu_custom_call.1} parent=35 // pred_fallthru
          _
        %s251 = sand.u32 %s25, 1
        %s252 = scalar_lea.sflag [#allocation6], %s251
        %s253 = sand.u32 %s80, 1
        %s254 = scalar_lea.vmem [#allocation7], %s253
        // Predicated region
        $region45: #{tpu_custom_call.1} parent=35 // pred_check
          %p255 = pneg %p93
        $region46: #{tpu_custom_call.1} parent=35 // pred_check_branch
          %257 = sbr.rel (%p255) target = $region48
        $region47: #{tpu_custom_call.1} parent=35 // pred_region
          %258 = dma.done %s252, 16
        $region48: #{tpu_custom_call.1} parent=35 // pred_fallthru
          _
        %s259 = sand.u32 %s106, 1
        %s260 = scalar_lea.sflag [#allocation9], %s259
        %s261 = sand.u32 %s106, 1
        %s262 = scalar_lea.vmem [#allocation8], %s261
        // Predicated region
        $region49: #{tpu_custom_call.1} parent=35 // pred_check
          %p263 = pneg %p119
        $region50: #{tpu_custom_call.1} parent=35 // pred_check_branch
          %265 = sbr.rel (%p263) target = $region52
        $region51: #{tpu_custom_call.1} parent=35 // pred_region
          %266 = dma.done %s260, 16
        $region52: #{tpu_custom_call.1} parent=35 // pred_fallthru
          _
        %p267 = pneg %p41
        %p268 = pneg %p38
        %s269 = sand.u32 %s25, 1
        %s270 = scalar_lea.sflag [#allocation6], %s269
        %s271 = sand.u32 %s54, 1
        %s272 = smul.addr %s271, 1152
        %s273 = scalar_lea.vmem [#allocation5], %s272
        %p274 = pneg %p67
        %p275 = pneg %p64
        %s276 = sand.u32 %s25, 1
        %s277 = scalar_lea.sflag [#allocation6], %s276
        %s278 = sand.u32 %s80, 1
        %s279 = scalar_lea.vmem [#allocation7], %s278
        %p280 = pneg %p93
        %p281 = pneg %p90
        %s282 = sand.u32 %s106, 1
        %s283 = scalar_lea.sflag [#allocation9], %s282
        %s284 = sand.u32 %s106, 1
        %s285 = scalar_lea.vmem [#allocation8], %s284
        %p286 = pneg %p119
        %p287 = pneg %p116
        %p288 = pneg %p145
        %p289 = pneg %p142
        %s290 = sand.u32 %s132, 1
        %s291 = scalar_lea.sflag [#allocation4], %s290
        %s292 = sand.u32 %s132, 1
        %s293 = smul.addr %s292, 128
        %s294 = scalar_lea.vmem [#allocation10], %s293
        %v296 = vld [vmem:[#allocation2] sm:$0xff]
        %v297 = vld [vmem:[#allocation2 + $0x8] sm:$0xff]
        %v298 = vld [vmem:[#allocation2 + $0x10] sm:$0xff]
        %v299 = vld [vmem:[#allocation2 + $0x18] sm:$0xff]
        %v300 = vld [vmem:[#allocation2 + $0x20] sm:$0xff]
        %v301 = vld [vmem:[#allocation2 + $0x28] sm:$0xff]
        %v302 = vld [vmem:[#allocation2 + $0x30] sm:$0xff]
        %v303 = vld [vmem:[#allocation2 + $0x38] sm:$0xff]
        %v304 = vld [vmem:[#allocation2 + $0x40] sm:$0xff]
        %v305 = vld [vmem:[#allocation2 + $0x48] sm:$0xff]
        %v306 = vld [vmem:[#allocation2 + $0x50] sm:$0xff]
        %v307 = vld [vmem:[#allocation2 + $0x58] sm:$0xff]
        %v308 = vld [vmem:[#allocation2 + $0x60] sm:$0xff]
        %v309 = vld [vmem:[#allocation2 + $0x68] sm:$0xff]
        %v310 = vld [vmem:[#allocation2 + $0x70] sm:$0xff]
        %v311 = vld [vmem:[#allocation2 + $0x78] sm:$0xff]
        %v312 = vld [vmem:[#allocation2 + $0x80] sm:$0xff]
        %v313 = vld [vmem:[#allocation2 + $0x88] sm:$0xff]
        %v314 = vld [vmem:[#allocation2 + $0x90] sm:$0xff]
        %v315 = vld [vmem:[#allocation2 + $0x98] sm:$0xff]
        %v316 = vld [vmem:[#allocation2 + $0xa0] sm:$0xff]
        %v317 = vld [vmem:[#allocation2 + $0xa8] sm:$0xff]
        %v318 = vld [vmem:[#allocation2 + $0xb0] sm:$0xff]
        %v319 = vld [vmem:[#allocation2 + $0xb8] sm:$0xff]
        %v320 = vld [vmem:[#allocation2 + $0xc0] sm:$0xff]
        %v321 = vld [vmem:[#allocation2 + $0xc8] sm:$0xff]
        %v322 = vld [vmem:[#allocation2 + $0xd0] sm:$0xff]
        %v323 = vld [vmem:[#allocation2 + $0xd8] sm:$0xff]
        %v324 = vld [vmem:[#allocation2 + $0xe0] sm:$0xff]
        %v325 = vld [vmem:[#allocation2 + $0xe8] sm:$0xff]
        %v326 = vld [vmem:[#allocation2 + $0xf0] sm:$0xff]
        %v327 = vld [vmem:[#allocation2 + $0xf8] sm:$0xff]
        %v328 = vld [vmem:[#allocation2 + $0x100] sm:$0xff]
        %v329 = vld [vmem:[#allocation2 + $0x108] sm:$0xff]
        %v330 = vld [vmem:[#allocation2 + $0x110] sm:$0xff]
        %v331 = vld [vmem:[#allocation2 + $0x118] sm:$0xff]
        %v332 = vld [vmem:[#allocation2 + $0x120] sm:$0xff]
        %v333 = vld [vmem:[#allocation2 + $0x128] sm:$0xff]
        %v334 = vld [vmem:[#allocation2 + $0x130] sm:$0xff]
        %v335 = vld [vmem:[#allocation2 + $0x138] sm:$0xff]
        %v336 = vld [vmem:[#allocation2 + $0x140] sm:$0xff]
        %v337 = vld [vmem:[#allocation2 + $0x148] sm:$0xff]
        %v338 = vld [vmem:[#allocation2 + $0x150] sm:$0xff]
        %v339 = vld [vmem:[#allocation2 + $0x158] sm:$0xff]
        %v340 = vld [vmem:[#allocation2 + $0x160] sm:$0xff]
        %v341 = vld [vmem:[#allocation2 + $0x168] sm:$0xff]
        %v342 = vld [vmem:[#allocation2 + $0x170] sm:$0xff]
        %v343 = vld [vmem:[#allocation2 + $0x178] sm:$0xff]
        %v344 = vld [vmem:[#allocation2 + $0x180] sm:$0xff]
        %v345 = vld [vmem:[#allocation2 + $0x188] sm:$0xff]
        %v346 = vld [vmem:[#allocation2 + $0x190] sm:$0xff]
        %v347 = vld [vmem:[#allocation2 + $0x198] sm:$0xff]
        %v348 = vld [vmem:[#allocation2 + $0x1a0] sm:$0xff]
        %v349 = vld [vmem:[#allocation2 + $0x1a8] sm:$0xff]
        %v350 = vld [vmem:[#allocation2 + $0x1b0] sm:$0xff]
        %v351 = vld [vmem:[#allocation2 + $0x1b8] sm:$0xff]
        %v352 = vld [vmem:[#allocation2 + $0x1c0] sm:$0xff]
        %v353 = vld [vmem:[#allocation2 + $0x1c8] sm:$0xff]
        %v354 = vld [vmem:[#allocation2 + $0x1d0] sm:$0xff]
        %v355 = vld [vmem:[#allocation2 + $0x1d8] sm:$0xff]
        %v356 = vld [vmem:[#allocation2 + $0x1e0] sm:$0xff]
        %v357 = vld [vmem:[#allocation2 + $0x1e8] sm:$0xff]
        %v358 = vld [vmem:[#allocation2 + $0x1f0] sm:$0xff]
        %v359 = vld [vmem:[#allocation2 + $0x1f8] sm:$0xff]
        %v360 = vld [vmem:[#allocation2 + $0x200] sm:$0xff]
        %v361 = vld [vmem:[#allocation2 + $0x208] sm:$0xff]
        %v362 = vld [vmem:[#allocation2 + $0x210] sm:$0xff]
        %v363 = vld [vmem:[#allocation2 + $0x218] sm:$0xff]
        %v364 = vld [vmem:[#allocation2 + $0x220] sm:$0xff]
        %v365 = vld [vmem:[#allocation2 + $0x228] sm:$0xff]
        %v366 = vld [vmem:[#allocation2 + $0x230] sm:$0xff]
        %v367 = vld [vmem:[#allocation2 + $0x238] sm:$0xff]
        %v368 = vld [vmem:[#allocation2 + $0x240] sm:$0xff]
        %v369 = vld [vmem:[#allocation2 + $0x248] sm:$0xff]
        %v370 = vld [vmem:[#allocation2 + $0x250] sm:$0xff]
        %v371 = vld [vmem:[#allocation2 + $0x258] sm:$0xff]
        %v372 = vld [vmem:[#allocation2 + $0x260] sm:$0xff]
        %v373 = vld [vmem:[#allocation2 + $0x268] sm:$0xff]
        %v374 = vld [vmem:[#allocation2 + $0x270] sm:$0xff]
        %v375 = vld [vmem:[#allocation2 + $0x278] sm:$0xff]
        %v376 = vld [vmem:[#allocation2 + $0x280] sm:$0xff]
        %v377 = vld [vmem:[#allocation2 + $0x288] sm:$0xff]
        %v378 = vld [vmem:[#allocation2 + $0x290] sm:$0xff]
        %v379 = vld [vmem:[#allocation2 + $0x298] sm:$0xff]
        %v380 = vld [vmem:[#allocation2 + $0x2a0] sm:$0xff]
        %v381 = vld [vmem:[#allocation2 + $0x2a8] sm:$0xff]
        %v382 = vld [vmem:[#allocation2 + $0x2b0] sm:$0xff]
        %v383 = vld [vmem:[#allocation2 + $0x2b8] sm:$0xff]
        %v384 = vld [vmem:[#allocation2 + $0x2c0] sm:$0xff]
        %v385 = vld [vmem:[#allocation2 + $0x2c8] sm:$0xff]
        %v386 = vld [vmem:[#allocation2 + $0x2d0] sm:$0xff]
        %v387 = vld [vmem:[#allocation2 + $0x2d8] sm:$0xff]
        %v388 = vld [vmem:[#allocation2 + $0x2e0] sm:$0xff]
        %v389 = vld [vmem:[#allocation2 + $0x2e8] sm:$0xff]
        %v390 = vld [vmem:[#allocation2 + $0x2f0] sm:$0xff]
        %v391 = vld [vmem:[#allocation2 + $0x2f8] sm:$0xff]
        %v392 = vld [vmem:[#allocation2 + $0x300] sm:$0xff]
        %v393 = vld [vmem:[#allocation2 + $0x308] sm:$0xff]
        %v394 = vld [vmem:[#allocation2 + $0x310] sm:$0xff]
        %v395 = vld [vmem:[#allocation2 + $0x318] sm:$0xff]
        %v396 = vld [vmem:[#allocation2 + $0x320] sm:$0xff]
        %v397 = vld [vmem:[#allocation2 + $0x328] sm:$0xff]
        %v398 = vld [vmem:[#allocation2 + $0x330] sm:$0xff]
        %v399 = vld [vmem:[#allocation2 + $0x338] sm:$0xff]
        %v400 = vld [vmem:[#allocation2 + $0x340] sm:$0xff]
        %v401 = vld [vmem:[#allocation2 + $0x348] sm:$0xff]
        %v402 = vld [vmem:[#allocation2 + $0x350] sm:$0xff]
        %v403 = vld [vmem:[#allocation2 + $0x358] sm:$0xff]
        %v404 = vld [vmem:[#allocation2 + $0x360] sm:$0xff]
        %v405 = vld [vmem:[#allocation2 + $0x368] sm:$0xff]
        %v406 = vld [vmem:[#allocation2 + $0x370] sm:$0xff]
        %v407 = vld [vmem:[#allocation2 + $0x378] sm:$0xff]
        %v408 = vld [vmem:[#allocation2 + $0x380] sm:$0xff]
        %v409 = vld [vmem:[#allocation2 + $0x388] sm:$0xff]
        %v410 = vld [vmem:[#allocation2 + $0x390] sm:$0xff]
        %v411 = vld [vmem:[#allocation2 + $0x398] sm:$0xff]
        %v412 = vld [vmem:[#allocation2 + $0x3a0] sm:$0xff]
        %v413 = vld [vmem:[#allocation2 + $0x3a8] sm:$0xff]
        %v414 = vld [vmem:[#allocation2 + $0x3b0] sm:$0xff]
        %v415 = vld [vmem:[#allocation2 + $0x3b8] sm:$0xff]
        %v416 = vld [vmem:[#allocation2 + $0x3c0] sm:$0xff]
        %v417 = vld [vmem:[#allocation2 + $0x3c8] sm:$0xff]
        %v418 = vld [vmem:[#allocation2 + $0x3d0] sm:$0xff]
        %v419 = vld [vmem:[#allocation2 + $0x3d8] sm:$0xff]
        %v420 = vld [vmem:[#allocation2 + $0x3e0] sm:$0xff]
        %v421 = vld [vmem:[#allocation2 + $0x3e8] sm:$0xff]
        %v422 = vld [vmem:[#allocation2 + $0x3f0] sm:$0xff]
        %v423 = vld [vmem:[#allocation2 + $0x3f8] sm:$0xff]
        %v424 = vld [vmem:[#allocation2 + $0x400] sm:$0xff]
        %v425 = vld [vmem:[#allocation2 + $0x408] sm:$0xff]
        %v426 = vld [vmem:[#allocation2 + $0x410] sm:$0xff]
        %v427 = vld [vmem:[#allocation2 + $0x418] sm:$0xff]
        %v428 = vld [vmem:[#allocation2 + $0x420] sm:$0xff]
        %v429 = vld [vmem:[#allocation2 + $0x428] sm:$0xff]
        %v430 = vld [vmem:[#allocation2 + $0x430] sm:$0xff]
        %v431 = vld [vmem:[#allocation2 + $0x438] sm:$0xff]
        %v432 = vld [vmem:[#allocation2 + $0x440] sm:$0xff]
        %v433 = vld [vmem:[#allocation2 + $0x448] sm:$0xff]
        %v434 = vld [vmem:[#allocation2 + $0x450] sm:$0xff]
        %v435 = vld [vmem:[#allocation2 + $0x458] sm:$0xff]
        %v436 = vld [vmem:[#allocation2 + $0x460] sm:$0xff]
        %v437 = vld [vmem:[#allocation2 + $0x468] sm:$0xff]
        %v438 = vld [vmem:[#allocation2 + $0x470] sm:$0xff]
        %v439 = vld [vmem:[#allocation2 + $0x478] sm:$0xff]
        %v440 = vld [vmem:[%s246] sm:$0xf]
        %v441 = vld [vmem:[%s246 + $0x4] sm:$0xf]
        %v442 = vld [vmem:[%s246 + $0x8] sm:$0xf]
        %v443 = vld [vmem:[%s246 + $0xc] sm:$0xf]
        %v444 = vld [vmem:[%s246 + $0x10] sm:$0xf]
        %v445 = vld [vmem:[%s246 + $0x14] sm:$0xf]
        %v446 = vld [vmem:[%s246 + $0x18] sm:$0xf]
        %v447 = vld [vmem:[%s246 + $0x1c] sm:$0xf]
        %v448 = vld [vmem:[%s246 + $0x20] sm:$0xf]
        %v449 = vld [vmem:[%s246 + $0x24] sm:$0xf]
        %v450 = vld [vmem:[%s246 + $0x28] sm:$0xf]
        %v451 = vld [vmem:[%s246 + $0x2c] sm:$0xf]
        %v452 = vld [vmem:[%s246 + $0x30] sm:$0xf]
        %v453 = vld [vmem:[%s246 + $0x34] sm:$0xf]
        %v454 = vld [vmem:[%s246 + $0x38] sm:$0xf]
        %v455 = vld [vmem:[%s246 + $0x3c] sm:$0xf]
        %v456 = vld [vmem:[%s246 + $0x40] sm:$0xf]
        %v457 = vld [vmem:[%s246 + $0x44] sm:$0xf]
        %v458 = vld [vmem:[%s246 + $0x48] sm:$0xf]
        %v459 = vld [vmem:[%s246 + $0x4c] sm:$0xf]
        %v460 = vld [vmem:[%s246 + $0x50] sm:$0xf]
        %v461 = vld [vmem:[%s246 + $0x54] sm:$0xf]
        %v462 = vld [vmem:[%s246 + $0x58] sm:$0xf]
        %v463 = vld [vmem:[%s246 + $0x5c] sm:$0xf]
        %v464 = vld [vmem:[%s246 + $0x60] sm:$0xf]
        %v465 = vld [vmem:[%s246 + $0x64] sm:$0xf]
        %v466 = vld [vmem:[%s246 + $0x68] sm:$0xf]
        %v467 = vld [vmem:[%s246 + $0x6c] sm:$0xf]
        %v468 = vld [vmem:[%s246 + $0x70] sm:$0xf]
        %v469 = vld [vmem:[%s246 + $0x74] sm:$0xf]
        %v470 = vld [vmem:[%s246 + $0x78] sm:$0xf]
        %v471 = vld [vmem:[%s246 + $0x7c] sm:$0xf]
        %v472 = vld [vmem:[%s246 + $0x80] sm:$0xf]
        %v473 = vld [vmem:[%s246 + $0x84] sm:$0xf]
        %v474 = vld [vmem:[%s246 + $0x88] sm:$0xf]
        %v475 = vld [vmem:[%s246 + $0x8c] sm:$0xf]
        %v476 = vld [vmem:[%s246 + $0x90] sm:$0xf]
        %v477 = vld [vmem:[%s246 + $0x94] sm:$0xf]
        %v478 = vld [vmem:[%s246 + $0x98] sm:$0xf]
        %v479 = vld [vmem:[%s246 + $0x9c] sm:$0xf]
        %v480 = vld [vmem:[%s246 + $0xa0] sm:$0xf]
        %v481 = vld [vmem:[%s246 + $0xa4] sm:$0xf]
        %v482 = vld [vmem:[%s246 + $0xa8] sm:$0xf]
        %v483 = vld [vmem:[%s246 + $0xac] sm:$0xf]
        %v484 = vld [vmem:[%s246 + $0xb0] sm:$0xf]
        %v485 = vld [vmem:[%s246 + $0xb4] sm:$0xf]
        %v486 = vld [vmem:[%s246 + $0xb8] sm:$0xf]
        %v487 = vld [vmem:[%s246 + $0xbc] sm:$0xf]
        %v488 = vld [vmem:[%s246 + $0xc0] sm:$0xf]
        %v489 = vld [vmem:[%s246 + $0xc4] sm:$0xf]
        %v490 = vld [vmem:[%s246 + $0xc8] sm:$0xf]
        %v491 = vld [vmem:[%s246 + $0xcc] sm:$0xf]
        %v492 = vld [vmem:[%s246 + $0xd0] sm:$0xf]
        %v493 = vld [vmem:[%s246 + $0xd4] sm:$0xf]
        %v494 = vld [vmem:[%s246 + $0xd8] sm:$0xf]
        %v495 = vld [vmem:[%s246 + $0xdc] sm:$0xf]
        %v496 = vld [vmem:[%s246 + $0xe0] sm:$0xf]
        %v497 = vld [vmem:[%s246 + $0xe4] sm:$0xf]
        %v498 = vld [vmem:[%s246 + $0xe8] sm:$0xf]
        %v499 = vld [vmem:[%s246 + $0xec] sm:$0xf]
        %v500 = vld [vmem:[%s246 + $0xf0] sm:$0xf]
        %v501 = vld [vmem:[%s246 + $0xf4] sm:$0xf]
        %v502 = vld [vmem:[%s246 + $0xf8] sm:$0xf]
        %v503 = vld [vmem:[%s246 + $0xfc] sm:$0xf]
        %v504 = vld [vmem:[%s246 + $0x100] sm:$0xf]
        %v505 = vld [vmem:[%s246 + $0x104] sm:$0xf]
        %v506 = vld [vmem:[%s246 + $0x108] sm:$0xf]
        %v507 = vld [vmem:[%s246 + $0x10c] sm:$0xf]
        %v508 = vld [vmem:[%s246 + $0x110] sm:$0xf]
        %v509 = vld [vmem:[%s246 + $0x114] sm:$0xf]
        %v510 = vld [vmem:[%s246 + $0x118] sm:$0xf]
        %v511 = vld [vmem:[%s246 + $0x11c] sm:$0xf]
        %v512 = vld [vmem:[%s246 + $0x120] sm:$0xf]
        %v513 = vld [vmem:[%s246 + $0x124] sm:$0xf]
        %v514 = vld [vmem:[%s246 + $0x128] sm:$0xf]
        %v515 = vld [vmem:[%s246 + $0x12c] sm:$0xf]
        %v516 = vld [vmem:[%s246 + $0x130] sm:$0xf]
        %v517 = vld [vmem:[%s246 + $0x134] sm:$0xf]
        %v518 = vld [vmem:[%s246 + $0x138] sm:$0xf]
        %v519 = vld [vmem:[%s246 + $0x13c] sm:$0xf]
        %v520 = vld [vmem:[%s246 + $0x140] sm:$0xf]
        %v521 = vld [vmem:[%s246 + $0x144] sm:$0xf]
        %v522 = vld [vmem:[%s246 + $0x148] sm:$0xf]
        %v523 = vld [vmem:[%s246 + $0x14c] sm:$0xf]
        %v524 = vld [vmem:[%s246 + $0x150] sm:$0xf]
        %v525 = vld [vmem:[%s246 + $0x154] sm:$0xf]
        %v526 = vld [vmem:[%s246 + $0x158] sm:$0xf]
        %v527 = vld [vmem:[%s246 + $0x15c] sm:$0xf]
        %v528 = vld [vmem:[%s246 + $0x160] sm:$0xf]
        %v529 = vld [vmem:[%s246 + $0x164] sm:$0xf]
        %v530 = vld [vmem:[%s246 + $0x168] sm:$0xf]
        %v531 = vld [vmem:[%s246 + $0x16c] sm:$0xf]
        %v532 = vld [vmem:[%s246 + $0x170] sm:$0xf]
        %v533 = vld [vmem:[%s246 + $0x174] sm:$0xf]
        %v534 = vld [vmem:[%s246 + $0x178] sm:$0xf]
        %v535 = vld [vmem:[%s246 + $0x17c] sm:$0xf]
        %v536 = vld [vmem:[%s246 + $0x180] sm:$0xf]
        %v537 = vld [vmem:[%s246 + $0x184] sm:$0xf]
        %v538 = vld [vmem:[%s246 + $0x188] sm:$0xf]
        %v539 = vld [vmem:[%s246 + $0x18c] sm:$0xf]
        %v540 = vld [vmem:[%s246 + $0x190] sm:$0xf]
        %v541 = vld [vmem:[%s246 + $0x194] sm:$0xf]
        %v542 = vld [vmem:[%s246 + $0x198] sm:$0xf]
        %v543 = vld [vmem:[%s246 + $0x19c] sm:$0xf]
        %v544 = vld [vmem:[%s246 + $0x1a0] sm:$0xf]
        %v545 = vld [vmem:[%s246 + $0x1a4] sm:$0xf]
        %v546 = vld [vmem:[%s246 + $0x1a8] sm:$0xf]
        %v547 = vld [vmem:[%s246 + $0x1ac] sm:$0xf]
        %v548 = vld [vmem:[%s246 + $0x1b0] sm:$0xf]
        %v549 = vld [vmem:[%s246 + $0x1b4] sm:$0xf]
        %v550 = vld [vmem:[%s246 + $0x1b8] sm:$0xf]
        %v551 = vld [vmem:[%s246 + $0x1bc] sm:$0xf]
        %v552 = vld [vmem:[%s246 + $0x1c0] sm:$0xf]
        %v553 = vld [vmem:[%s246 + $0x1c4] sm:$0xf]
        %v554 = vld [vmem:[%s246 + $0x1c8] sm:$0xf]
        %v555 = vld [vmem:[%s246 + $0x1cc] sm:$0xf]
        %v556 = vld [vmem:[%s246 + $0x1d0] sm:$0xf]
        %v557 = vld [vmem:[%s246 + $0x1d4] sm:$0xf]
        %v558 = vld [vmem:[%s246 + $0x1d8] sm:$0xf]
        %v559 = vld [vmem:[%s246 + $0x1dc] sm:$0xf]
        %v560 = vld [vmem:[%s246 + $0x1e0] sm:$0xf]
        %v561 = vld [vmem:[%s246 + $0x1e4] sm:$0xf]
        %v562 = vld [vmem:[%s246 + $0x1e8] sm:$0xf]
        %v563 = vld [vmem:[%s246 + $0x1ec] sm:$0xf]
        %v564 = vld [vmem:[%s246 + $0x1f0] sm:$0xf]
        %v565 = vld [vmem:[%s246 + $0x1f4] sm:$0xf]
        %v566 = vld [vmem:[%s246 + $0x1f8] sm:$0xf]
        %v567 = vld [vmem:[%s246 + $0x1fc] sm:$0xf]
        %v568 = vld [vmem:[%s246 + $0x200] sm:$0xf]
        %v569 = vld [vmem:[%s246 + $0x204] sm:$0xf]
        %v570 = vld [vmem:[%s246 + $0x208] sm:$0xf]
        %v571 = vld [vmem:[%s246 + $0x20c] sm:$0xf]
        %v572 = vld [vmem:[%s246 + $0x210] sm:$0xf]
        %v573 = vld [vmem:[%s246 + $0x214] sm:$0xf]
        %v574 = vld [vmem:[%s246 + $0x218] sm:$0xf]
        %v575 = vld [vmem:[%s246 + $0x21c] sm:$0xf]
        %v576 = vld [vmem:[%s246 + $0x220] sm:$0xf]
        %v577 = vld [vmem:[%s246 + $0x224] sm:$0xf]
        %v578 = vld [vmem:[%s246 + $0x228] sm:$0xf]
        %v579 = vld [vmem:[%s246 + $0x22c] sm:$0xf]
        %v580 = vld [vmem:[%s246 + $0x230] sm:$0xf]
        %v581 = vld [vmem:[%s246 + $0x234] sm:$0xf]
        %v582 = vld [vmem:[%s246 + $0x238] sm:$0xf]
        %v583 = vld [vmem:[%s246 + $0x23c] sm:$0xf]
        %v584 = vld [vmem:[%s246 + $0x240] sm:$0xf]
        %v585 = vld [vmem:[%s246 + $0x244] sm:$0xf]
        %v586 = vld [vmem:[%s246 + $0x248] sm:$0xf]
        %v587 = vld [vmem:[%s246 + $0x24c] sm:$0xf]
        %v588 = vld [vmem:[%s246 + $0x250] sm:$0xf]
        %v589 = vld [vmem:[%s246 + $0x254] sm:$0xf]
        %v590 = vld [vmem:[%s246 + $0x258] sm:$0xf]
        %v591 = vld [vmem:[%s246 + $0x25c] sm:$0xf]
        %v592 = vld [vmem:[%s246 + $0x260] sm:$0xf]
        %v593 = vld [vmem:[%s246 + $0x264] sm:$0xf]
        %v594 = vld [vmem:[%s246 + $0x268] sm:$0xf]
        %v595 = vld [vmem:[%s246 + $0x26c] sm:$0xf]
        %v596 = vld [vmem:[%s246 + $0x270] sm:$0xf]
        %v597 = vld [vmem:[%s246 + $0x274] sm:$0xf]
        %v598 = vld [vmem:[%s246 + $0x278] sm:$0xf]
        %v599 = vld [vmem:[%s246 + $0x27c] sm:$0xf]
        %v600 = vld [vmem:[%s246 + $0x280] sm:$0xf]
        %v601 = vld [vmem:[%s246 + $0x284] sm:$0xf]
        %v602 = vld [vmem:[%s246 + $0x288] sm:$0xf]
        %v603 = vld [vmem:[%s246 + $0x28c] sm:$0xf]
        %v604 = vld [vmem:[%s246 + $0x290] sm:$0xf]
        %v605 = vld [vmem:[%s246 + $0x294] sm:$0xf]
        %v606 = vld [vmem:[%s246 + $0x298] sm:$0xf]
        %v607 = vld [vmem:[%s246 + $0x29c] sm:$0xf]
        %v608 = vld [vmem:[%s246 + $0x2a0] sm:$0xf]
        %v609 = vld [vmem:[%s246 + $0x2a4] sm:$0xf]
        %v610 = vld [vmem:[%s246 + $0x2a8] sm:$0xf]
        %v611 = vld [vmem:[%s246 + $0x2ac] sm:$0xf]
        %v612 = vld [vmem:[%s246 + $0x2b0] sm:$0xf]
        %v613 = vld [vmem:[%s246 + $0x2b4] sm:$0xf]
        %v614 = vld [vmem:[%s246 + $0x2b8] sm:$0xf]
        %v615 = vld [vmem:[%s246 + $0x2bc] sm:$0xf]
        %v616 = vld [vmem:[%s246 + $0x2c0] sm:$0xf]
        %v617 = vld [vmem:[%s246 + $0x2c4] sm:$0xf]
        %v618 = vld [vmem:[%s246 + $0x2c8] sm:$0xf]
        %v619 = vld [vmem:[%s246 + $0x2cc] sm:$0xf]
        %v620 = vld [vmem:[%s246 + $0x2d0] sm:$0xf]
        %v621 = vld [vmem:[%s246 + $0x2d4] sm:$0xf]
        %v622 = vld [vmem:[%s246 + $0x2d8] sm:$0xf]
        %v623 = vld [vmem:[%s246 + $0x2dc] sm:$0xf]
        %v624 = vld [vmem:[%s246 + $0x2e0] sm:$0xf]
        %v625 = vld [vmem:[%s246 + $0x2e4] sm:$0xf]
        %v626 = vld [vmem:[%s246 + $0x2e8] sm:$0xf]
        %v627 = vld [vmem:[%s246 + $0x2ec] sm:$0xf]
        %v628 = vld [vmem:[%s246 + $0x2f0] sm:$0xf]
        %v629 = vld [vmem:[%s246 + $0x2f4] sm:$0xf]
        %v630 = vld [vmem:[%s246 + $0x2f8] sm:$0xf]
        %v631 = vld [vmem:[%s246 + $0x2fc] sm:$0xf]
        %v632 = vld [vmem:[%s246 + $0x300] sm:$0xf]
        %v633 = vld [vmem:[%s246 + $0x304] sm:$0xf]
        %v634 = vld [vmem:[%s246 + $0x308] sm:$0xf]
        %v635 = vld [vmem:[%s246 + $0x30c] sm:$0xf]
        %v636 = vld [vmem:[%s246 + $0x310] sm:$0xf]
        %v637 = vld [vmem:[%s246 + $0x314] sm:$0xf]
        %v638 = vld [vmem:[%s246 + $0x318] sm:$0xf]
        %v639 = vld [vmem:[%s246 + $0x31c] sm:$0xf]
        %v640 = vld [vmem:[%s246 + $0x320] sm:$0xf]
        %v641 = vld [vmem:[%s246 + $0x324] sm:$0xf]
        %v642 = vld [vmem:[%s246 + $0x328] sm:$0xf]
        %v643 = vld [vmem:[%s246 + $0x32c] sm:$0xf]
        %v644 = vld [vmem:[%s246 + $0x330] sm:$0xf]
        %v645 = vld [vmem:[%s246 + $0x334] sm:$0xf]
        %v646 = vld [vmem:[%s246 + $0x338] sm:$0xf]
        %v647 = vld [vmem:[%s246 + $0x33c] sm:$0xf]
        %v648 = vld [vmem:[%s246 + $0x340] sm:$0xf]
        %v649 = vld [vmem:[%s246 + $0x344] sm:$0xf]
        %v650 = vld [vmem:[%s246 + $0x348] sm:$0xf]
        %v651 = vld [vmem:[%s246 + $0x34c] sm:$0xf]
        %v652 = vld [vmem:[%s246 + $0x350] sm:$0xf]
        %v653 = vld [vmem:[%s246 + $0x354] sm:$0xf]
        %v654 = vld [vmem:[%s246 + $0x358] sm:$0xf]
        %v655 = vld [vmem:[%s246 + $0x35c] sm:$0xf]
        %v656 = vld [vmem:[%s246 + $0x360] sm:$0xf]
        %v657 = vld [vmem:[%s246 + $0x364] sm:$0xf]
        %v658 = vld [vmem:[%s246 + $0x368] sm:$0xf]
        %v659 = vld [vmem:[%s246 + $0x36c] sm:$0xf]
        %v660 = vld [vmem:[%s246 + $0x370] sm:$0xf]
        %v661 = vld [vmem:[%s246 + $0x374] sm:$0xf]
        %v662 = vld [vmem:[%s246 + $0x378] sm:$0xf]
        %v663 = vld [vmem:[%s246 + $0x37c] sm:$0xf]
        %v664 = vld [vmem:[%s246 + $0x380] sm:$0xf]
        %v665 = vld [vmem:[%s246 + $0x384] sm:$0xf]
        %v666 = vld [vmem:[%s246 + $0x388] sm:$0xf]
        %v667 = vld [vmem:[%s246 + $0x38c] sm:$0xf]
        %v668 = vld [vmem:[%s246 + $0x390] sm:$0xf]
        %v669 = vld [vmem:[%s246 + $0x394] sm:$0xf]
        %v670 = vld [vmem:[%s246 + $0x398] sm:$0xf]
        %v671 = vld [vmem:[%s246 + $0x39c] sm:$0xf]
        %v672 = vld [vmem:[%s246 + $0x3a0] sm:$0xf]
        %v673 = vld [vmem:[%s246 + $0x3a4] sm:$0xf]
        %v674 = vld [vmem:[%s246 + $0x3a8] sm:$0xf]
        %v675 = vld [vmem:[%s246 + $0x3ac] sm:$0xf]
        %v676 = vld [vmem:[%s246 + $0x3b0] sm:$0xf]
        %v677 = vld [vmem:[%s246 + $0x3b4] sm:$0xf]
        %v678 = vld [vmem:[%s246 + $0x3b8] sm:$0xf]
        %v679 = vld [vmem:[%s246 + $0x3bc] sm:$0xf]
        %v680 = vld [vmem:[%s246 + $0x3c0] sm:$0xf]
        %v681 = vld [vmem:[%s246 + $0x3c4] sm:$0xf]
        %v682 = vld [vmem:[%s246 + $0x3c8] sm:$0xf]
        %v683 = vld [vmem:[%s246 + $0x3cc] sm:$0xf]
        %v684 = vld [vmem:[%s246 + $0x3d0] sm:$0xf]
        %v685 = vld [vmem:[%s246 + $0x3d4] sm:$0xf]
        %v686 = vld [vmem:[%s246 + $0x3d8] sm:$0xf]
        %v687 = vld [vmem:[%s246 + $0x3dc] sm:$0xf]
        %v688 = vld [vmem:[%s246 + $0x3e0] sm:$0xf]
        %v689 = vld [vmem:[%s246 + $0x3e4] sm:$0xf]
        %v690 = vld [vmem:[%s246 + $0x3e8] sm:$0xf]
        %v691 = vld [vmem:[%s246 + $0x3ec] sm:$0xf]
        %v692 = vld [vmem:[%s246 + $0x3f0] sm:$0xf]
        %v693 = vld [vmem:[%s246 + $0x3f4] sm:$0xf]
        %v694 = vld [vmem:[%s246 + $0x3f8] sm:$0xf]
        %v695 = vld [vmem:[%s246 + $0x3fc] sm:$0xf]
        %v696 = vld [vmem:[%s246 + $0x400] sm:$0xf]
        %v697 = vld [vmem:[%s246 + $0x404] sm:$0xf]
        %v698 = vld [vmem:[%s246 + $0x408] sm:$0xf]
        %v699 = vld [vmem:[%s246 + $0x40c] sm:$0xf]
        %v700 = vld [vmem:[%s246 + $0x410] sm:$0xf]
        %v701 = vld [vmem:[%s246 + $0x414] sm:$0xf]
        %v702 = vld [vmem:[%s246 + $0x418] sm:$0xf]
        %v703 = vld [vmem:[%s246 + $0x41c] sm:$0xf]
        %v704 = vld [vmem:[%s246 + $0x420] sm:$0xf]
        %v705 = vld [vmem:[%s246 + $0x424] sm:$0xf]
        %v706 = vld [vmem:[%s246 + $0x428] sm:$0xf]
        %v707 = vld [vmem:[%s246 + $0x42c] sm:$0xf]
        %v708 = vld [vmem:[%s246 + $0x430] sm:$0xf]
        %v709 = vld [vmem:[%s246 + $0x434] sm:$0xf]
        %v710 = vld [vmem:[%s246 + $0x438] sm:$0xf]
        %v711 = vld [vmem:[%s246 + $0x43c] sm:$0xf]
        %v712 = vld [vmem:[%s246 + $0x440] sm:$0xf]
        %v713 = vld [vmem:[%s246 + $0x444] sm:$0xf]
        %v714 = vld [vmem:[%s246 + $0x448] sm:$0xf]
        %v715 = vld [vmem:[%s246 + $0x44c] sm:$0xf]
        %v716 = vld [vmem:[%s246 + $0x450] sm:$0xf]
        %v717 = vld [vmem:[%s246 + $0x454] sm:$0xf]
        %v718 = vld [vmem:[%s246 + $0x458] sm:$0xf]
        %v719 = vld [vmem:[%s246 + $0x45c] sm:$0xf]
        %v720 = vld [vmem:[%s246 + $0x460] sm:$0xf]
        %v721 = vld [vmem:[%s246 + $0x464] sm:$0xf]
        %v722 = vld [vmem:[%s246 + $0x468] sm:$0xf]
        %v723 = vld [vmem:[%s246 + $0x46c] sm:$0xf]
        %v724 = vld [vmem:[%s246 + $0x470] sm:$0xf]
        %v725 = vld [vmem:[%s246 + $0x474] sm:$0xf]
        %v726 = vld [vmem:[%s246 + $0x478] sm:$0xf]
        %v727 = vld [vmem:[%s246 + $0x47c] sm:$0xf]
        %v872 = vunpack.c.l.b16 %v296
        %v873 = vunpack.c.h.b16 %v296
        %v874 = vunpack.c.l.b16 %v297
        %v875 = vunpack.c.h.b16 %v297
        %v876 = vunpack.c.l.b16 %v298
        %v877 = vunpack.c.h.b16 %v298
        %v878 = vunpack.c.l.b16 %v299
        %v879 = vunpack.c.h.b16 %v299
        %v880 = vunpack.c.l.b16 %v300
        %v881 = vunpack.c.h.b16 %v300
        %v882 = vunpack.c.l.b16 %v301
        %v883 = vunpack.c.h.b16 %v301
        %v884 = vunpack.c.l.b16 %v302
        %v885 = vunpack.c.h.b16 %v302
        %v886 = vunpack.c.l.b16 %v303
        %v887 = vunpack.c.h.b16 %v303
        %v888 = vunpack.c.l.b16 %v304
        %v889 = vunpack.c.h.b16 %v304
        %v890 = vunpack.c.l.b16 %v305
        %v891 = vunpack.c.h.b16 %v305
        %v892 = vunpack.c.l.b16 %v306
        %v893 = vunpack.c.h.b16 %v306
        %v894 = vunpack.c.l.b16 %v307
        %v895 = vunpack.c.h.b16 %v307
        %v896 = vunpack.c.l.b16 %v308
        %v897 = vunpack.c.h.b16 %v308
        %v898 = vunpack.c.l.b16 %v309
        %v899 = vunpack.c.h.b16 %v309
        %v900 = vunpack.c.l.b16 %v310
        %v901 = vunpack.c.h.b16 %v310
        %v902 = vunpack.c.l.b16 %v311
        %v903 = vunpack.c.h.b16 %v311
        %v904 = vunpack.c.l.b16 %v312
        %v905 = vunpack.c.h.b16 %v312
        %v906 = vunpack.c.l.b16 %v313
        %v907 = vunpack.c.h.b16 %v313
        %v908 = vunpack.c.l.b16 %v314
        %v909 = vunpack.c.h.b16 %v314
        %v910 = vunpack.c.l.b16 %v315
        %v911 = vunpack.c.h.b16 %v315
        %v912 = vunpack.c.l.b16 %v316
        %v913 = vunpack.c.h.b16 %v316
        %v914 = vunpack.c.l.b16 %v317
        %v915 = vunpack.c.h.b16 %v317
        %v916 = vunpack.c.l.b16 %v318
        %v917 = vunpack.c.h.b16 %v318
        %v918 = vunpack.c.l.b16 %v319
        %v919 = vunpack.c.h.b16 %v319
        %v920 = vunpack.c.l.b16 %v320
        %v921 = vunpack.c.h.b16 %v320
        %v922 = vunpack.c.l.b16 %v321
        %v923 = vunpack.c.h.b16 %v321
        %v924 = vunpack.c.l.b16 %v322
        %v925 = vunpack.c.h.b16 %v322
        %v926 = vunpack.c.l.b16 %v323
        %v927 = vunpack.c.h.b16 %v323
        %v928 = vunpack.c.l.b16 %v324
        %v929 = vunpack.c.h.b16 %v324
        %v930 = vunpack.c.l.b16 %v325
        %v931 = vunpack.c.h.b16 %v325
        %v932 = vunpack.c.l.b16 %v326
        %v933 = vunpack.c.h.b16 %v326
        %v934 = vunpack.c.l.b16 %v327
        %v935 = vunpack.c.h.b16 %v327
        %v936 = vunpack.c.l.b16 %v328
        %v937 = vunpack.c.h.b16 %v328
        %v938 = vunpack.c.l.b16 %v329
        %v939 = vunpack.c.h.b16 %v329
        %v940 = vunpack.c.l.b16 %v330
        %v941 = vunpack.c.h.b16 %v330
        %v942 = vunpack.c.l.b16 %v331
        %v943 = vunpack.c.h.b16 %v331
        %v944 = vunpack.c.l.b16 %v332
        %v945 = vunpack.c.h.b16 %v332
        %v946 = vunpack.c.l.b16 %v333
        %v947 = vunpack.c.h.b16 %v333
        %v948 = vunpack.c.l.b16 %v334
        %v949 = vunpack.c.h.b16 %v334
        %v950 = vunpack.c.l.b16 %v335
        %v951 = vunpack.c.h.b16 %v335
        %v952 = vunpack.c.l.b16 %v336
        %v953 = vunpack.c.h.b16 %v336
        %v954 = vunpack.c.l.b16 %v337
        %v955 = vunpack.c.h.b16 %v337
        %v956 = vunpack.c.l.b16 %v338
        %v957 = vunpack.c.h.b16 %v338
        %v958 = vunpack.c.l.b16 %v339
        %v959 = vunpack.c.h.b16 %v339
        %v960 = vunpack.c.l.b16 %v340
        %v961 = vunpack.c.h.b16 %v340
        %v962 = vunpack.c.l.b16 %v341
        %v963 = vunpack.c.h.b16 %v341
        %v964 = vunpack.c.l.b16 %v342
        %v965 = vunpack.c.h.b16 %v342
        %v966 = vunpack.c.l.b16 %v343
        %v967 = vunpack.c.h.b16 %v343
        %v968 = vunpack.c.l.b16 %v344
        %v969 = vunpack.c.h.b16 %v344
        %v970 = vunpack.c.l.b16 %v345
        %v971 = vunpack.c.h.b16 %v345
        %v972 = vunpack.c.l.b16 %v346
        %v973 = vunpack.c.h.b16 %v346
        %v974 = vunpack.c.l.b16 %v347
        %v975 = vunpack.c.h.b16 %v347
        %v976 = vunpack.c.l.b16 %v348
        %v977 = vunpack.c.h.b16 %v348
        %v978 = vunpack.c.l.b16 %v349
        %v979 = vunpack.c.h.b16 %v349
        %v980 = vunpack.c.l.b16 %v350
        %v981 = vunpack.c.h.b16 %v350
        %v982 = vunpack.c.l.b16 %v351
        %v983 = vunpack.c.h.b16 %v351
        %v984 = vunpack.c.l.b16 %v352
        %v985 = vunpack.c.h.b16 %v352
        %v986 = vunpack.c.l.b16 %v353
        %v987 = vunpack.c.h.b16 %v353
        %v988 = vunpack.c.l.b16 %v354
        %v989 = vunpack.c.h.b16 %v354
        %v990 = vunpack.c.l.b16 %v355
        %v991 = vunpack.c.h.b16 %v355
        %v992 = vunpack.c.l.b16 %v356
        %v993 = vunpack.c.h.b16 %v356
        %v994 = vunpack.c.l.b16 %v357
        %v995 = vunpack.c.h.b16 %v357
        %v996 = vunpack.c.l.b16 %v358
        %v997 = vunpack.c.h.b16 %v358
        %v998 = vunpack.c.l.b16 %v359
        %v999 = vunpack.c.h.b16 %v359
        %v1000 = vunpack.c.l.b16 %v360
        %v1001 = vunpack.c.h.b16 %v360
        %v1002 = vunpack.c.l.b16 %v361
        %v1003 = vunpack.c.h.b16 %v361
        %v1004 = vunpack.c.l.b16 %v362
        %v1005 = vunpack.c.h.b16 %v362
        %v1006 = vunpack.c.l.b16 %v363
        %v1007 = vunpack.c.h.b16 %v363
        %v1008 = vunpack.c.l.b16 %v364
        %v1009 = vunpack.c.h.b16 %v364
        %v1010 = vunpack.c.l.b16 %v365
        %v1011 = vunpack.c.h.b16 %v365
        %v1012 = vunpack.c.l.b16 %v366
        %v1013 = vunpack.c.h.b16 %v366
        %v1014 = vunpack.c.l.b16 %v367
        %v1015 = vunpack.c.h.b16 %v367
        %v1016 = vunpack.c.l.b16 %v368
        %v1017 = vunpack.c.h.b16 %v368
        %v1018 = vunpack.c.l.b16 %v369
        %v1019 = vunpack.c.h.b16 %v369
        %v1020 = vunpack.c.l.b16 %v370
        %v1021 = vunpack.c.h.b16 %v370
        %v1022 = vunpack.c.l.b16 %v371
        %v1023 = vunpack.c.h.b16 %v371
        %v1024 = vunpack.c.l.b16 %v372
        %v1025 = vunpack.c.h.b16 %v372
        %v1026 = vunpack.c.l.b16 %v373
        %v1027 = vunpack.c.h.b16 %v373
        %v1028 = vunpack.c.l.b16 %v374
        %v1029 = vunpack.c.h.b16 %v374
        %v1030 = vunpack.c.l.b16 %v375
        %v1031 = vunpack.c.h.b16 %v375
        %v1032 = vunpack.c.l.b16 %v376
        %v1033 = vunpack.c.h.b16 %v376
        %v1034 = vunpack.c.l.b16 %v377
        %v1035 = vunpack.c.h.b16 %v377
        %v1036 = vunpack.c.l.b16 %v378
        %v1037 = vunpack.c.h.b16 %v378
        %v1038 = vunpack.c.l.b16 %v379
        %v1039 = vunpack.c.h.b16 %v379
        %v1040 = vunpack.c.l.b16 %v380
        %v1041 = vunpack.c.h.b16 %v380
        %v1042 = vunpack.c.l.b16 %v381
        %v1043 = vunpack.c.h.b16 %v381
        %v1044 = vunpack.c.l.b16 %v382
        %v1045 = vunpack.c.h.b16 %v382
        %v1046 = vunpack.c.l.b16 %v383
        %v1047 = vunpack.c.h.b16 %v383
        %v1048 = vunpack.c.l.b16 %v384
        %v1049 = vunpack.c.h.b16 %v384
        %v1050 = vunpack.c.l.b16 %v385
        %v1051 = vunpack.c.h.b16 %v385
        %v1052 = vunpack.c.l.b16 %v386
        %v1053 = vunpack.c.h.b16 %v386
        %v1054 = vunpack.c.l.b16 %v387
        %v1055 = vunpack.c.h.b16 %v387
        %v1056 = vunpack.c.l.b16 %v388
        %v1057 = vunpack.c.h.b16 %v388
        %v1058 = vunpack.c.l.b16 %v389
        %v1059 = vunpack.c.h.b16 %v389
        %v1060 = vunpack.c.l.b16 %v390
        %v1061 = vunpack.c.h.b16 %v390
        %v1062 = vunpack.c.l.b16 %v391
        %v1063 = vunpack.c.h.b16 %v391
        %v1064 = vunpack.c.l.b16 %v392
        %v1065 = vunpack.c.h.b16 %v392
        %v1066 = vunpack.c.l.b16 %v393
        %v1067 = vunpack.c.h.b16 %v393
        %v1068 = vunpack.c.l.b16 %v394
        %v1069 = vunpack.c.h.b16 %v394
        %v1070 = vunpack.c.l.b16 %v395
        %v1071 = vunpack.c.h.b16 %v395
        %v1072 = vunpack.c.l.b16 %v396
        %v1073 = vunpack.c.h.b16 %v396
        %v1074 = vunpack.c.l.b16 %v397
        %v1075 = vunpack.c.h.b16 %v397
        %v1076 = vunpack.c.l.b16 %v398
        %v1077 = vunpack.c.h.b16 %v398
        %v1078 = vunpack.c.l.b16 %v399
        %v1079 = vunpack.c.h.b16 %v399
        %v1080 = vunpack.c.l.b16 %v400
        %v1081 = vunpack.c.h.b16 %v400
        %v1082 = vunpack.c.l.b16 %v401
        %v1083 = vunpack.c.h.b16 %v401
        %v1084 = vunpack.c.l.b16 %v402
        %v1085 = vunpack.c.h.b16 %v402
        %v1086 = vunpack.c.l.b16 %v403
        %v1087 = vunpack.c.h.b16 %v403
        %v1088 = vunpack.c.l.b16 %v404
        %v1089 = vunpack.c.h.b16 %v404
        %v1090 = vunpack.c.l.b16 %v405
        %v1091 = vunpack.c.h.b16 %v405
        %v1092 = vunpack.c.l.b16 %v406
        %v1093 = vunpack.c.h.b16 %v406
        %v1094 = vunpack.c.l.b16 %v407
        %v1095 = vunpack.c.h.b16 %v407
        %v1096 = vunpack.c.l.b16 %v408
        %v1097 = vunpack.c.h.b16 %v408
        %v1098 = vunpack.c.l.b16 %v409
        %v1099 = vunpack.c.h.b16 %v409
        %v1100 = vunpack.c.l.b16 %v410
        %v1101 = vunpack.c.h.b16 %v410
        %v1102 = vunpack.c.l.b16 %v411
        %v1103 = vunpack.c.h.b16 %v411
        %v1104 = vunpack.c.l.b16 %v412
        %v1105 = vunpack.c.h.b16 %v412
        %v1106 = vunpack.c.l.b16 %v413
        %v1107 = vunpack.c.h.b16 %v413
        %v1108 = vunpack.c.l.b16 %v414
        %v1109 = vunpack.c.h.b16 %v414
        %v1110 = vunpack.c.l.b16 %v415
        %v1111 = vunpack.c.h.b16 %v415
        %v1112 = vunpack.c.l.b16 %v416
        %v1113 = vunpack.c.h.b16 %v416
        %v1114 = vunpack.c.l.b16 %v417
        %v1115 = vunpack.c.h.b16 %v417
        %v1116 = vunpack.c.l.b16 %v418
        %v1117 = vunpack.c.h.b16 %v418
        %v1118 = vunpack.c.l.b16 %v419
        %v1119 = vunpack.c.h.b16 %v419
        %v1120 = vunpack.c.l.b16 %v420
        %v1121 = vunpack.c.h.b16 %v420
        %v1122 = vunpack.c.l.b16 %v421
        %v1123 = vunpack.c.h.b16 %v421
        %v1124 = vunpack.c.l.b16 %v422
        %v1125 = vunpack.c.h.b16 %v422
        %v1126 = vunpack.c.l.b16 %v423
        %v1127 = vunpack.c.h.b16 %v423
        %v1128 = vunpack.c.l.b16 %v424
        %v1129 = vunpack.c.h.b16 %v424
        %v1130 = vunpack.c.l.b16 %v425
        %v1131 = vunpack.c.h.b16 %v425
        %v1132 = vunpack.c.l.b16 %v426
        %v1133 = vunpack.c.h.b16 %v426
        %v1134 = vunpack.c.l.b16 %v427
        %v1135 = vunpack.c.h.b16 %v427
        %v1136 = vunpack.c.l.b16 %v428
        %v1137 = vunpack.c.h.b16 %v428
        %v1138 = vunpack.c.l.b16 %v429
        %v1139 = vunpack.c.h.b16 %v429
        %v1140 = vunpack.c.l.b16 %v430
        %v1141 = vunpack.c.h.b16 %v430
        %v1142 = vunpack.c.l.b16 %v431
        %v1143 = vunpack.c.h.b16 %v431
        %v1144 = vunpack.c.l.b16 %v432
        %v1145 = vunpack.c.h.b16 %v432
        %v1146 = vunpack.c.l.b16 %v433
        %v1147 = vunpack.c.h.b16 %v433
        %v1148 = vunpack.c.l.b16 %v434
        %v1149 = vunpack.c.h.b16 %v434
        %v1150 = vunpack.c.l.b16 %v435
        %v1151 = vunpack.c.h.b16 %v435
        %v1152 = vunpack.c.l.b16 %v436
        %v1153 = vunpack.c.h.b16 %v436
        %v1154 = vunpack.c.l.b16 %v437
        %v1155 = vunpack.c.h.b16 %v437
        %v1156 = vunpack.c.l.b16 %v438
        %v1157 = vunpack.c.h.b16 %v438
        %v1158 = vunpack.c.l.b16 %v439
        %v1159 = vunpack.c.h.b16 %v439
        %v1160 = vpack.c.b16 %v890, %v872
        %v1161 = vpack.c.b16 %v891, %v873
        %v1162 = vpack.c.b16 %v892, %v874
        %v1163 = vpack.c.b16 %v893, %v875
        %v1164 = vpack.c.b16 %v894, %v876
        %v1165 = vpack.c.b16 %v895, %v877
        %v1166 = vpack.c.b16 %v896, %v878
        %v1167 = vpack.c.b16 %v897, %v879
        %v1168 = vpack.c.b16 %v898, %v880
        %v1169 = vpack.c.b16 %v899, %v881
        %v1170 = vpack.c.b16 %v900, %v882
        %v1171 = vpack.c.b16 %v901, %v883
        %v1172 = vpack.c.b16 %v902, %v884
        %v1173 = vpack.c.b16 %v903, %v885
        %v1174 = vpack.c.b16 %v904, %v886
        %v1175 = vpack.c.b16 %v905, %v887
        %v1176 = vpack.c.b16 %v906, %v888
        %v1177 = vpack.c.b16 %v907, %v889
        %v1178 = vpack.c.b16 %v926, %v908
        %v1179 = vpack.c.b16 %v927, %v909
        %v1180 = vpack.c.b16 %v928, %v910
        %v1181 = vpack.c.b16 %v929, %v911
        %v1182 = vpack.c.b16 %v930, %v912
        %v1183 = vpack.c.b16 %v931, %v913
        %v1184 = vpack.c.b16 %v932, %v914
        %v1185 = vpack.c.b16 %v933, %v915
        %v1186 = vpack.c.b16 %v934, %v916
        %v1187 = vpack.c.b16 %v935, %v917
        %v1188 = vpack.c.b16 %v936, %v918
        %v1189 = vpack.c.b16 %v937, %v919
        %v1190 = vpack.c.b16 %v938, %v920
        %v1191 = vpack.c.b16 %v939, %v921
        %v1192 = vpack.c.b16 %v940, %v922
        %v1193 = vpack.c.b16 %v941, %v923
        %v1194 = vpack.c.b16 %v942, %v924
        %v1195 = vpack.c.b16 %v943, %v925
        %v1196 = vpack.c.b16 %v962, %v944
        %v1197 = vpack.c.b16 %v963, %v945
        %v1198 = vpack.c.b16 %v964, %v946
        %v1199 = vpack.c.b16 %v965, %v947
        %v1200 = vpack.c.b16 %v966, %v948
        %v1201 = vpack.c.b16 %v967, %v949
        %v1202 = vpack.c.b16 %v968, %v950
        %v1203 = vpack.c.b16 %v969, %v951
        %v1204 = vpack.c.b16 %v970, %v952
        %v1205 = vpack.c.b16 %v971, %v953
        %v1206 = vpack.c.b16 %v972, %v954
        %v1207 = vpack.c.b16 %v973, %v955
        %v1208 = vpack.c.b16 %v974, %v956
        %v1209 = vpack.c.b16 %v975, %v957
        %v1210 = vpack.c.b16 %v976, %v958
        %v1211 = vpack.c.b16 %v977, %v959
        %v1212 = vpack.c.b16 %v978, %v960
        %v1213 = vpack.c.b16 %v979, %v961
        %v1214 = vpack.c.b16 %v998, %v980
        %v1215 = vpack.c.b16 %v999, %v981
        %v1216 = vpack.c.b16 %v1000, %v982
        %v1217 = vpack.c.b16 %v1001, %v983
        %v1218 = vpack.c.b16 %v1002, %v984
        %v1219 = vpack.c.b16 %v1003, %v985
        %v1220 = vpack.c.b16 %v1004, %v986
        %v1221 = vpack.c.b16 %v1005, %v987
        %v1222 = vpack.c.b16 %v1006, %v988
        %v1223 = vpack.c.b16 %v1007, %v989
        %v1224 = vpack.c.b16 %v1008, %v990
        %v1225 = vpack.c.b16 %v1009, %v991
        %v1226 = vpack.c.b16 %v1010, %v992
        %v1227 = vpack.c.b16 %v1011, %v993
        %v1228 = vpack.c.b16 %v1012, %v994
        %v1229 = vpack.c.b16 %v1013, %v995
        %v1230 = vpack.c.b16 %v1014, %v996
        %v1231 = vpack.c.b16 %v1015, %v997
        %v1232 = vpack.c.b16 %v1034, %v1016
        %v1233 = vpack.c.b16 %v1035, %v1017
        %v1234 = vpack.c.b16 %v1036, %v1018
        %v1235 = vpack.c.b16 %v1037, %v1019
        %v1236 = vpack.c.b16 %v1038, %v1020
        %v1237 = vpack.c.b16 %v1039, %v1021
        %v1238 = vpack.c.b16 %v1040, %v1022
        %v1239 = vpack.c.b16 %v1041, %v1023
        %v1240 = vpack.c.b16 %v1042, %v1024
        %v1241 = vpack.c.b16 %v1043, %v1025
        %v1242 = vpack.c.b16 %v1044, %v1026
        %v1243 = vpack.c.b16 %v1045, %v1027
        %v1244 = vpack.c.b16 %v1046, %v1028
        %v1245 = vpack.c.b16 %v1047, %v1029
        %v1246 = vpack.c.b16 %v1048, %v1030
        %v1247 = vpack.c.b16 %v1049, %v1031
        %v1248 = vpack.c.b16 %v1050, %v1032
        %v1249 = vpack.c.b16 %v1051, %v1033
        %v1250 = vpack.c.b16 %v1070, %v1052
        %v1251 = vpack.c.b16 %v1071, %v1053
        %v1252 = vpack.c.b16 %v1072, %v1054
        %v1253 = vpack.c.b16 %v1073, %v1055
        %v1254 = vpack.c.b16 %v1074, %v1056
        %v1255 = vpack.c.b16 %v1075, %v1057
        %v1256 = vpack.c.b16 %v1076, %v1058
        %v1257 = vpack.c.b16 %v1077, %v1059
        %v1258 = vpack.c.b16 %v1078, %v1060
        %v1259 = vpack.c.b16 %v1079, %v1061
        %v1260 = vpack.c.b16 %v1080, %v1062
        %v1261 = vpack.c.b16 %v1081, %v1063
        %v1262 = vpack.c.b16 %v1082, %v1064
        %v1263 = vpack.c.b16 %v1083, %v1065
        %v1264 = vpack.c.b16 %v1084, %v1066
        %v1265 = vpack.c.b16 %v1085, %v1067
        %v1266 = vpack.c.b16 %v1086, %v1068
        %v1267 = vpack.c.b16 %v1087, %v1069
        %v1268 = vpack.c.b16 %v1106, %v1088
        %v1269 = vpack.c.b16 %v1107, %v1089
        %v1270 = vpack.c.b16 %v1108, %v1090
        %v1271 = vpack.c.b16 %v1109, %v1091
        %v1272 = vpack.c.b16 %v1110, %v1092
        %v1273 = vpack.c.b16 %v1111, %v1093
        %v1274 = vpack.c.b16 %v1112, %v1094
        %v1275 = vpack.c.b16 %v1113, %v1095
        %v1276 = vpack.c.b16 %v1114, %v1096
        %v1277 = vpack.c.b16 %v1115, %v1097
        %v1278 = vpack.c.b16 %v1116, %v1098
        %v1279 = vpack.c.b16 %v1117, %v1099
        %v1280 = vpack.c.b16 %v1118, %v1100
        %v1281 = vpack.c.b16 %v1119, %v1101
        %v1282 = vpack.c.b16 %v1120, %v1102
        %v1283 = vpack.c.b16 %v1121, %v1103
        %v1284 = vpack.c.b16 %v1122, %v1104
        %v1285 = vpack.c.b16 %v1123, %v1105
        %v1286 = vpack.c.b16 %v1142, %v1124
        %v1287 = vpack.c.b16 %v1143, %v1125
        %v1288 = vpack.c.b16 %v1144, %v1126
        %v1289 = vpack.c.b16 %v1145, %v1127
        %v1290 = vpack.c.b16 %v1146, %v1128
        %v1291 = vpack.c.b16 %v1147, %v1129
        %v1292 = vpack.c.b16 %v1148, %v1130
        %v1293 = vpack.c.b16 %v1149, %v1131
        %v1294 = vpack.c.b16 %v1150, %v1132
        %v1295 = vpack.c.b16 %v1151, %v1133
        %v1296 = vpack.c.b16 %v1152, %v1134
        %v1297 = vpack.c.b16 %v1153, %v1135
        %v1298 = vpack.c.b16 %v1154, %v1136
        %v1299 = vpack.c.b16 %v1155, %v1137
        %v1300 = vpack.c.b16 %v1156, %v1138
        %v1301 = vpack.c.b16 %v1157, %v1139
        %v1302 = vpack.c.b16 %v1158, %v1140
        %v1303 = vpack.c.b16 %v1159, %v1141
        %v1736 = vunpack.c.l.b16 %v440
        %v1737 = vunpack.c.l.b16 %v441
        %v1738 = vunpack.c.l.b16 %v442
        %v1739 = vunpack.c.l.b16 %v443
        %v1740 = vunpack.c.l.b16 %v444
        %v1741 = vunpack.c.l.b16 %v445
        %v1742 = vunpack.c.l.b16 %v446
        %v1743 = vunpack.c.l.b16 %v447
        %v1744 = vunpack.c.l.b16 %v448
        %v1745 = vunpack.c.l.b16 %v449
        %v1746 = vunpack.c.l.b16 %v450
        %v1747 = vunpack.c.l.b16 %v451
        %v1748 = vunpack.c.l.b16 %v452
        %v1749 = vunpack.c.l.b16 %v453
        %v1750 = vunpack.c.l.b16 %v454
        %v1751 = vunpack.c.l.b16 %v455
        %v1752 = vunpack.c.l.b16 %v456
        %v1753 = vunpack.c.l.b16 %v457
        %v1754 = vunpack.c.l.b16 %v458
        %v1755 = vunpack.c.l.b16 %v459
        %v1756 = vunpack.c.l.b16 %v460
        %v1757 = vunpack.c.l.b16 %v461
        %v1758 = vunpack.c.l.b16 %v462
        %v1759 = vunpack.c.l.b16 %v463
        %v1760 = vunpack.c.l.b16 %v464
        %v1761 = vunpack.c.l.b16 %v465
        %v1762 = vunpack.c.l.b16 %v466
        %v1763 = vunpack.c.l.b16 %v467
        %v1764 = vunpack.c.l.b16 %v468
        %v1765 = vunpack.c.l.b16 %v469
        %v1766 = vunpack.c.l.b16 %v470
        %v1767 = vunpack.c.l.b16 %v471
        %v1768 = vunpack.c.l.b16 %v472
        %v1769 = vunpack.c.l.b16 %v473
        %v1770 = vunpack.c.l.b16 %v474
        %v1771 = vunpack.c.l.b16 %v475
        %v1772 = vunpack.c.l.b16 %v476
        %v1773 = vunpack.c.l.b16 %v477
        %v1774 = vunpack.c.l.b16 %v478
        %v1775 = vunpack.c.l.b16 %v479
        %v1776 = vunpack.c.l.b16 %v480
        %v1777 = vunpack.c.l.b16 %v481
        %v1778 = vunpack.c.l.b16 %v482
        %v1779 = vunpack.c.l.b16 %v483
        %v1780 = vunpack.c.l.b16 %v484
        %v1781 = vunpack.c.l.b16 %v485
        %v1782 = vunpack.c.l.b16 %v486
        %v1783 = vunpack.c.l.b16 %v487
        %v1784 = vunpack.c.l.b16 %v488
        %v1785 = vunpack.c.l.b16 %v489
        %v1786 = vunpack.c.l.b16 %v490
        %v1787 = vunpack.c.l.b16 %v491
        %v1788 = vunpack.c.l.b16 %v492
        %v1789 = vunpack.c.l.b16 %v493
        %v1790 = vunpack.c.l.b16 %v494
        %v1791 = vunpack.c.l.b16 %v495
        %v1792 = vunpack.c.l.b16 %v496
        %v1793 = vunpack.c.l.b16 %v497
        %v1794 = vunpack.c.l.b16 %v498
        %v1795 = vunpack.c.l.b16 %v499
        %v1796 = vunpack.c.l.b16 %v500
        %v1797 = vunpack.c.l.b16 %v501
        %v1798 = vunpack.c.l.b16 %v502
        %v1799 = vunpack.c.l.b16 %v503
        %v1800 = vunpack.c.l.b16 %v504
        %v1801 = vunpack.c.l.b16 %v505
        %v1802 = vunpack.c.l.b16 %v506
        %v1803 = vunpack.c.l.b16 %v507
        %v1804 = vunpack.c.l.b16 %v508
        %v1805 = vunpack.c.l.b16 %v509
        %v1806 = vunpack.c.l.b16 %v510
        %v1807 = vunpack.c.l.b16 %v511
        %v1808 = vunpack.c.l.b16 %v512
        %v1809 = vunpack.c.l.b16 %v513
        %v1810 = vunpack.c.l.b16 %v514
        %v1811 = vunpack.c.l.b16 %v515
        %v1812 = vunpack.c.l.b16 %v516
        %v1813 = vunpack.c.l.b16 %v517
        %v1814 = vunpack.c.l.b16 %v518
        %v1815 = vunpack.c.l.b16 %v519
        %v1816 = vunpack.c.l.b16 %v520
        %v1817 = vunpack.c.l.b16 %v521
        %v1818 = vunpack.c.l.b16 %v522
        %v1819 = vunpack.c.l.b16 %v523
        %v1820 = vunpack.c.l.b16 %v524
        %v1821 = vunpack.c.l.b16 %v525
        %v1822 = vunpack.c.l.b16 %v526
        %v1823 = vunpack.c.l.b16 %v527
        %v1824 = vunpack.c.l.b16 %v528
        %v1825 = vunpack.c.l.b16 %v529
        %v1826 = vunpack.c.l.b16 %v530
        %v1827 = vunpack.c.l.b16 %v531
        %v1828 = vunpack.c.l.b16 %v532
        %v1829 = vunpack.c.l.b16 %v533
        %v1830 = vunpack.c.l.b16 %v534
        %v1831 = vunpack.c.l.b16 %v535
        %v1832 = vunpack.c.l.b16 %v536
        %v1833 = vunpack.c.l.b16 %v537
        %v1834 = vunpack.c.l.b16 %v538
        %v1835 = vunpack.c.l.b16 %v539
        %v1836 = vunpack.c.l.b16 %v540
        %v1837 = vunpack.c.l.b16 %v541
        %v1838 = vunpack.c.l.b16 %v542
        %v1839 = vunpack.c.l.b16 %v543
        %v1840 = vunpack.c.l.b16 %v544
        %v1841 = vunpack.c.l.b16 %v545
        %v1842 = vunpack.c.l.b16 %v546
        %v1843 = vunpack.c.l.b16 %v547
        %v1844 = vunpack.c.l.b16 %v548
        %v1845 = vunpack.c.l.b16 %v549
        %v1846 = vunpack.c.l.b16 %v550
        %v1847 = vunpack.c.l.b16 %v551
        %v1848 = vunpack.c.l.b16 %v552
        %v1849 = vunpack.c.l.b16 %v553
        %v1850 = vunpack.c.l.b16 %v554
        %v1851 = vunpack.c.l.b16 %v555
        %v1852 = vunpack.c.l.b16 %v556
        %v1853 = vunpack.c.l.b16 %v557
        %v1854 = vunpack.c.l.b16 %v558
        %v1855 = vunpack.c.l.b16 %v559
        %v1856 = vunpack.c.l.b16 %v560
        %v1857 = vunpack.c.l.b16 %v561
        %v1858 = vunpack.c.l.b16 %v562
        %v1859 = vunpack.c.l.b16 %v563
        %v1860 = vunpack.c.l.b16 %v564
        %v1861 = vunpack.c.l.b16 %v565
        %v1862 = vunpack.c.l.b16 %v566
        %v1863 = vunpack.c.l.b16 %v567
        %v1864 = vunpack.c.l.b16 %v568
        %v1865 = vunpack.c.l.b16 %v569
        %v1866 = vunpack.c.l.b16 %v570
        %v1867 = vunpack.c.l.b16 %v571
        %v1868 = vunpack.c.l.b16 %v572
        %v1869 = vunpack.c.l.b16 %v573
        %v1870 = vunpack.c.l.b16 %v574
        %v1871 = vunpack.c.l.b16 %v575
        %v1872 = vunpack.c.l.b16 %v576
        %v1873 = vunpack.c.l.b16 %v577
        %v1874 = vunpack.c.l.b16 %v578
        %v1875 = vunpack.c.l.b16 %v579
        %v1876 = vunpack.c.l.b16 %v580
        %v1877 = vunpack.c.l.b16 %v581
        %v1878 = vunpack.c.l.b16 %v582
        %v1879 = vunpack.c.l.b16 %v583
        %v1880 = vunpack.c.l.b16 %v584
        %v1881 = vunpack.c.l.b16 %v585
        %v1882 = vunpack.c.l.b16 %v586
        %v1883 = vunpack.c.l.b16 %v587
        %v1884 = vunpack.c.l.b16 %v588
        %v1885 = vunpack.c.l.b16 %v589
        %v1886 = vunpack.c.l.b16 %v590
        %v1887 = vunpack.c.l.b16 %v591
        %v1888 = vunpack.c.l.b16 %v592
        %v1889 = vunpack.c.l.b16 %v593
        %v1890 = vunpack.c.l.b16 %v594
        %v1891 = vunpack.c.l.b16 %v595
        %v1892 = vunpack.c.l.b16 %v596
        %v1893 = vunpack.c.l.b16 %v597
        %v1894 = vunpack.c.l.b16 %v598
        %v1895 = vunpack.c.l.b16 %v599
        %v1896 = vunpack.c.l.b16 %v600
        %v1897 = vunpack.c.l.b16 %v601
        %v1898 = vunpack.c.l.b16 %v602
        %v1899 = vunpack.c.l.b16 %v603
        %v1900 = vunpack.c.l.b16 %v604
        %v1901 = vunpack.c.l.b16 %v605
        %v1902 = vunpack.c.l.b16 %v606
        %v1903 = vunpack.c.l.b16 %v607
        %v1904 = vunpack.c.l.b16 %v608
        %v1905 = vunpack.c.l.b16 %v609
        %v1906 = vunpack.c.l.b16 %v610
        %v1907 = vunpack.c.l.b16 %v611
        %v1908 = vunpack.c.l.b16 %v612
        %v1909 = vunpack.c.l.b16 %v613
        %v1910 = vunpack.c.l.b16 %v614
        %v1911 = vunpack.c.l.b16 %v615
        %v1912 = vunpack.c.l.b16 %v616
        %v1913 = vunpack.c.l.b16 %v617
        %v1914 = vunpack.c.l.b16 %v618
        %v1915 = vunpack.c.l.b16 %v619
        %v1916 = vunpack.c.l.b16 %v620
        %v1917 = vunpack.c.l.b16 %v621
        %v1918 = vunpack.c.l.b16 %v622
        %v1919 = vunpack.c.l.b16 %v623
        %v1920 = vunpack.c.l.b16 %v624
        %v1921 = vunpack.c.l.b16 %v625
        %v1922 = vunpack.c.l.b16 %v626
        %v1923 = vunpack.c.l.b16 %v627
        %v1924 = vunpack.c.l.b16 %v628
        %v1925 = vunpack.c.l.b16 %v629
        %v1926 = vunpack.c.l.b16 %v630
        %v1927 = vunpack.c.l.b16 %v631
        %v1928 = vunpack.c.l.b16 %v632
        %v1929 = vunpack.c.l.b16 %v633
        %v1930 = vunpack.c.l.b16 %v634
        %v1931 = vunpack.c.l.b16 %v635
        %v1932 = vunpack.c.l.b16 %v636
        %v1933 = vunpack.c.l.b16 %v637
        %v1934 = vunpack.c.l.b16 %v638
        %v1935 = vunpack.c.l.b16 %v639
        %v1936 = vunpack.c.l.b16 %v640
        %v1937 = vunpack.c.l.b16 %v641
        %v1938 = vunpack.c.l.b16 %v642
        %v1939 = vunpack.c.l.b16 %v643
        %v1940 = vunpack.c.l.b16 %v644
        %v1941 = vunpack.c.l.b16 %v645
        %v1942 = vunpack.c.l.b16 %v646
        %v1943 = vunpack.c.l.b16 %v647
        %v1944 = vunpack.c.l.b16 %v648
        %v1945 = vunpack.c.l.b16 %v649
        %v1946 = vunpack.c.l.b16 %v650
        %v1947 = vunpack.c.l.b16 %v651
        %v1948 = vunpack.c.l.b16 %v652
        %v1949 = vunpack.c.l.b16 %v653
        %v1950 = vunpack.c.l.b16 %v654
        %v1951 = vunpack.c.l.b16 %v655
        %v1952 = vunpack.c.l.b16 %v656
        %v1953 = vunpack.c.l.b16 %v657
        %v1954 = vunpack.c.l.b16 %v658
        %v1955 = vunpack.c.l.b16 %v659
        %v1956 = vunpack.c.l.b16 %v660
        %v1957 = vunpack.c.l.b16 %v661
        %v1958 = vunpack.c.l.b16 %v662
        %v1959 = vunpack.c.l.b16 %v663
        %v1960 = vunpack.c.l.b16 %v664
        %v1961 = vunpack.c.l.b16 %v665
        %v1962 = vunpack.c.l.b16 %v666
        %v1963 = vunpack.c.l.b16 %v667
        %v1964 = vunpack.c.l.b16 %v668
        %v1965 = vunpack.c.l.b16 %v669
        %v1966 = vunpack.c.l.b16 %v670
        %v1967 = vunpack.c.l.b16 %v671
        %v1968 = vunpack.c.l.b16 %v672
        %v1969 = vunpack.c.l.b16 %v673
        %v1970 = vunpack.c.l.b16 %v674
        %v1971 = vunpack.c.l.b16 %v675
        %v1972 = vunpack.c.l.b16 %v676
        %v1973 = vunpack.c.l.b16 %v677
        %v1974 = vunpack.c.l.b16 %v678
        %v1975 = vunpack.c.l.b16 %v679
        %v1976 = vunpack.c.l.b16 %v680
        %v1977 = vunpack.c.l.b16 %v681
        %v1978 = vunpack.c.l.b16 %v682
        %v1979 = vunpack.c.l.b16 %v683
        %v1980 = vunpack.c.l.b16 %v684
        %v1981 = vunpack.c.l.b16 %v685
        %v1982 = vunpack.c.l.b16 %v686
        %v1983 = vunpack.c.l.b16 %v687
        %v1984 = vunpack.c.l.b16 %v688
        %v1985 = vunpack.c.l.b16 %v689
        %v1986 = vunpack.c.l.b16 %v690
        %v1987 = vunpack.c.l.b16 %v691
        %v1988 = vunpack.c.l.b16 %v692
        %v1989 = vunpack.c.l.b16 %v693
        %v1990 = vunpack.c.l.b16 %v694
        %v1991 = vunpack.c.l.b16 %v695
        %v1992 = vunpack.c.l.b16 %v696
        %v1993 = vunpack.c.l.b16 %v697
        %v1994 = vunpack.c.l.b16 %v698
        %v1995 = vunpack.c.l.b16 %v699
        %v1996 = vunpack.c.l.b16 %v700
        %v1997 = vunpack.c.l.b16 %v701
        %v1998 = vunpack.c.l.b16 %v702
        %v1999 = vunpack.c.l.b16 %v703
        %v2000 = vunpack.c.l.b16 %v704
        %v2001 = vunpack.c.l.b16 %v705
        %v2002 = vunpack.c.l.b16 %v706
        %v2003 = vunpack.c.l.b16 %v707
        %v2004 = vunpack.c.l.b16 %v708
        %v2005 = vunpack.c.l.b16 %v709
        %v2006 = vunpack.c.l.b16 %v710
        %v2007 = vunpack.c.l.b16 %v711
        %v2008 = vunpack.c.l.b16 %v712
        %v2009 = vunpack.c.l.b16 %v713
        %v2010 = vunpack.c.l.b16 %v714
        %v2011 = vunpack.c.l.b16 %v715
        %v2012 = vunpack.c.l.b16 %v716
        %v2013 = vunpack.c.l.b16 %v717
        %v2014 = vunpack.c.l.b16 %v718
        %v2015 = vunpack.c.l.b16 %v719
        %v2016 = vunpack.c.l.b16 %v720
        %v2017 = vunpack.c.l.b16 %v721
        %v2018 = vunpack.c.l.b16 %v722
        %v2019 = vunpack.c.l.b16 %v723
        %v2020 = vunpack.c.l.b16 %v724
        %v2021 = vunpack.c.l.b16 %v725
        %v2022 = vunpack.c.l.b16 %v726
        %v2023 = vunpack.c.l.b16 %v727
        %v2024 = vpack.c.b16 %v1737, %v1736
        %v2025 = vpack.c.b16 %v1739, %v1738
        %v2026 = vpack.c.b16 %v1741, %v1740
        %v2027 = vpack.c.b16 %v1743, %v1742
        %v2028 = vpack.c.b16 %v1745, %v1744
        %v2029 = vpack.c.b16 %v1747, %v1746
        %v2030 = vpack.c.b16 %v1749, %v1748
        %v2031 = vpack.c.b16 %v1751, %v1750
        %v2032 = vpack.c.b16 %v1753, %v1752
        %v2033 = vpack.c.b16 %v1755, %v1754
        %v2034 = vpack.c.b16 %v1757, %v1756
        %v2035 = vpack.c.b16 %v1759, %v1758
        %v2036 = vpack.c.b16 %v1761, %v1760
        %v2037 = vpack.c.b16 %v1763, %v1762
        %v2038 = vpack.c.b16 %v1765, %v1764
        %v2039 = vpack.c.b16 %v1767, %v1766
        %v2040 = vpack.c.b16 %v1769, %v1768
        %v2041 = vpack.c.b16 %v1771, %v1770
        %v2042 = vpack.c.b16 %v1773, %v1772
        %v2043 = vpack.c.b16 %v1775, %v1774
        %v2044 = vpack.c.b16 %v1777, %v1776
        %v2045 = vpack.c.b16 %v1779, %v1778
        %v2046 = vpack.c.b16 %v1781, %v1780
        %v2047 = vpack.c.b16 %v1783, %v1782
        %v2048 = vpack.c.b16 %v1785, %v1784
        %v2049 = vpack.c.b16 %v1787, %v1786
        %v2050 = vpack.c.b16 %v1789, %v1788
        %v2051 = vpack.c.b16 %v1791, %v1790
        %v2052 = vpack.c.b16 %v1793, %v1792
        %v2053 = vpack.c.b16 %v1795, %v1794
        %v2054 = vpack.c.b16 %v1797, %v1796
        %v2055 = vpack.c.b16 %v1799, %v1798
        %v2056 = vpack.c.b16 %v1801, %v1800
        %v2057 = vpack.c.b16 %v1803, %v1802
        %v2058 = vpack.c.b16 %v1805, %v1804
        %v2059 = vpack.c.b16 %v1807, %v1806
        %v2060 = vpack.c.b16 %v1809, %v1808
        %v2061 = vpack.c.b16 %v1811, %v1810
        %v2062 = vpack.c.b16 %v1813, %v1812
        %v2063 = vpack.c.b16 %v1815, %v1814
        %v2064 = vpack.c.b16 %v1817, %v1816
        %v2065 = vpack.c.b16 %v1819, %v1818
        %v2066 = vpack.c.b16 %v1821, %v1820
        %v2067 = vpack.c.b16 %v1823, %v1822
        %v2068 = vpack.c.b16 %v1825, %v1824
        %v2069 = vpack.c.b16 %v1827, %v1826
        %v2070 = vpack.c.b16 %v1829, %v1828
        %v2071 = vpack.c.b16 %v1831, %v1830
        %v2072 = vpack.c.b16 %v1833, %v1832
        %v2073 = vpack.c.b16 %v1835, %v1834
        %v2074 = vpack.c.b16 %v1837, %v1836
        %v2075 = vpack.c.b16 %v1839, %v1838
        %v2076 = vpack.c.b16 %v1841, %v1840
        %v2077 = vpack.c.b16 %v1843, %v1842
        %v2078 = vpack.c.b16 %v1845, %v1844
        %v2079 = vpack.c.b16 %v1847, %v1846
        %v2080 = vpack.c.b16 %v1849, %v1848
        %v2081 = vpack.c.b16 %v1851, %v1850
        %v2082 = vpack.c.b16 %v1853, %v1852
        %v2083 = vpack.c.b16 %v1855, %v1854
        %v2084 = vpack.c.b16 %v1857, %v1856
        %v2085 = vpack.c.b16 %v1859, %v1858
        %v2086 = vpack.c.b16 %v1861, %v1860
        %v2087 = vpack.c.b16 %v1863, %v1862
        %v2088 = vpack.c.b16 %v1865, %v1864
        %v2089 = vpack.c.b16 %v1867, %v1866
        %v2090 = vpack.c.b16 %v1869, %v1868
        %v2091 = vpack.c.b16 %v1871, %v1870
        %v2092 = vpack.c.b16 %v1873, %v1872
        %v2093 = vpack.c.b16 %v1875, %v1874
        %v2094 = vpack.c.b16 %v1877, %v1876
        %v2095 = vpack.c.b16 %v1879, %v1878
        %v2096 = vpack.c.b16 %v1881, %v1880
        %v2097 = vpack.c.b16 %v1883, %v1882
        %v2098 = vpack.c.b16 %v1885, %v1884
        %v2099 = vpack.c.b16 %v1887, %v1886
        %v2100 = vpack.c.b16 %v1889, %v1888
        %v2101 = vpack.c.b16 %v1891, %v1890
        %v2102 = vpack.c.b16 %v1893, %v1892
        %v2103 = vpack.c.b16 %v1895, %v1894
        %v2104 = vpack.c.b16 %v1897, %v1896
        %v2105 = vpack.c.b16 %v1899, %v1898
        %v2106 = vpack.c.b16 %v1901, %v1900
        %v2107 = vpack.c.b16 %v1903, %v1902
        %v2108 = vpack.c.b16 %v1905, %v1904
        %v2109 = vpack.c.b16 %v1907, %v1906
        %v2110 = vpack.c.b16 %v1909, %v1908
        %v2111 = vpack.c.b16 %v1911, %v1910
        %v2112 = vpack.c.b16 %v1913, %v1912
        %v2113 = vpack.c.b16 %v1915, %v1914
        %v2114 = vpack.c.b16 %v1917, %v1916
        %v2115 = vpack.c.b16 %v1919, %v1918
        %v2116 = vpack.c.b16 %v1921, %v1920
        %v2117 = vpack.c.b16 %v1923, %v1922
        %v2118 = vpack.c.b16 %v1925, %v1924
        %v2119 = vpack.c.b16 %v1927, %v1926
        %v2120 = vpack.c.b16 %v1929, %v1928
        %v2121 = vpack.c.b16 %v1931, %v1930
        %v2122 = vpack.c.b16 %v1933, %v1932
        %v2123 = vpack.c.b16 %v1935, %v1934
        %v2124 = vpack.c.b16 %v1937, %v1936
        %v2125 = vpack.c.b16 %v1939, %v1938
        %v2126 = vpack.c.b16 %v1941, %v1940
        %v2127 = vpack.c.b16 %v1943, %v1942
        %v2128 = vpack.c.b16 %v1945, %v1944
        %v2129 = vpack.c.b16 %v1947, %v1946
        %v2130 = vpack.c.b16 %v1949, %v1948
        %v2131 = vpack.c.b16 %v1951, %v1950
        %v2132 = vpack.c.b16 %v1953, %v1952
        %v2133 = vpack.c.b16 %v1955, %v1954
        %v2134 = vpack.c.b16 %v1957, %v1956
        %v2135 = vpack.c.b16 %v1959, %v1958
        %v2136 = vpack.c.b16 %v1961, %v1960
        %v2137 = vpack.c.b16 %v1963, %v1962
        %v2138 = vpack.c.b16 %v1965, %v1964
        %v2139 = vpack.c.b16 %v1967, %v1966
        %v2140 = vpack.c.b16 %v1969, %v1968
        %v2141 = vpack.c.b16 %v1971, %v1970
        %v2142 = vpack.c.b16 %v1973, %v1972
        %v2143 = vpack.c.b16 %v1975, %v1974
        %v2144 = vpack.c.b16 %v1977, %v1976
        %v2145 = vpack.c.b16 %v1979, %v1978
        %v2146 = vpack.c.b16 %v1981, %v1980
        %v2147 = vpack.c.b16 %v1983, %v1982
        %v2148 = vpack.c.b16 %v1985, %v1984
        %v2149 = vpack.c.b16 %v1987, %v1986
        %v2150 = vpack.c.b16 %v1989, %v1988
        %v2151 = vpack.c.b16 %v1991, %v1990
        %v2152 = vpack.c.b16 %v1993, %v1992
        %v2153 = vpack.c.b16 %v1995, %v1994
        %v2154 = vpack.c.b16 %v1997, %v1996
        %v2155 = vpack.c.b16 %v1999, %v1998
        %v2156 = vpack.c.b16 %v2001, %v2000
        %v2157 = vpack.c.b16 %v2003, %v2002
        %v2158 = vpack.c.b16 %v2005, %v2004
        %v2159 = vpack.c.b16 %v2007, %v2006
        %v2160 = vpack.c.b16 %v2009, %v2008
        %v2161 = vpack.c.b16 %v2011, %v2010
        %v2162 = vpack.c.b16 %v2013, %v2012
        %v2163 = vpack.c.b16 %v2015, %v2014
        %v2164 = vpack.c.b16 %v2017, %v2016
        %v2165 = vpack.c.b16 %v2019, %v2018
        %v2166 = vpack.c.b16 %v2021, %v2020
        %v2167 = vpack.c.b16 %v2023, %v2022
        %2312 = vmatprep.subr.bf16.mxu0 0
        %2313 = vmatpush1.bf16.msra.mxu0 %v2024
        %2314 = vmatprep.subr.bf16.mxu0 0
        %2315 = vmatpush1.bf16.msra.mxu0 %v2025
        %2316 = vmatprep.subr.bf16.mxu0 0
        %2317 = vmatpush1.bf16.msra.mxu0 %v2026
        %2318 = vmatprep.subr.bf16.mxu0 0
        %2319 = vmatpush1.bf16.msra.mxu0 %v2027
        %2320 = vmatprep.subr.bf16.mxu0 0
        %2321 = vmatpush1.bf16.msra.mxu0 %v2028
        %2322 = vmatprep.subr.bf16.mxu0 0
        %2323 = vmatpush1.bf16.msra.mxu0 %v2029
        %2324 = vmatprep.subr.bf16.mxu0 0
        %2325 = vmatpush1.bf16.msra.mxu0 %v2030
        %2326 = vmatprep.subr.bf16.mxu0 0
        %2327 = vmatpush1.bf16.msra.mxu0 %v2031
        %2328 = vmatprep.subr.bf16.mxu0 0
        %2329 = vmatpush1.bf16.msra.mxu0 %v2032
        %2330 = vmatprep.subr.bf16.mxu0 0
        %2331 = vmatpush1.bf16.msra.mxu0 %v2033
        %2332 = vmatprep.subr.bf16.mxu0 0
        %2333 = vmatpush1.bf16.msra.mxu0 %v2034
        %2334 = vmatprep.subr.bf16.mxu0 0
        %2335 = vmatpush1.bf16.msra.mxu0 %v2035
        %2336 = vmatprep.subr.bf16.mxu0 0
        %2337 = vmatpush1.bf16.msra.mxu0 %v2036
        %2338 = vmatprep.subr.bf16.mxu0 0
        %2339 = vmatpush1.bf16.msra.mxu0 %v2037
        %2340 = vmatprep.subr.bf16.mxu0 0
        %2341 = vmatpush1.bf16.msra.mxu0 %v2038
        %2342 = vmatprep.subr.bf16.mxu0 0
        %2343 = vmatpush1.bf16.msra.mxu0 %v2039
        %2344 = vmatprep.mubr.bf16.mxu0 %v1161
        %2345 = vmatmul.mubr.bf16.gmra.mrb[0].mxu0 %v1160
        %v2346 = vpop.f32.mrb[0].mxu0
        %v2347 = vadd.f32 0.0, %v2346
        %v2348 = vpop.f32.mrb[0].mxu0
        %v2349 = vpop.f32.mrb[0].mxu0
        %v2350 = vadd.f32 0.0, %v2349
        %v2351 = vpop.f32.mrb[0].mxu0
        %2352 = vmatprep.mubr.bf16.mxu0 %v1179
        %2353 = vmatmul.mubr.bf16.gmra.mrb[0].mxu0 %v1178
        %v2354 = vpop.f32.mrb[0].mxu0
        %v2355 = vadd.f32 0.0, %v2354
        %v2356 = vpop.f32.mrb[0].mxu0
        %v2357 = vpop.f32.mrb[0].mxu0
        %v2358 = vadd.f32 0.0, %v2357
        %v2359 = vpop.f32.mrb[0].mxu0
        %2360 = vmatprep.mubr.bf16.mxu0 %v1197
        %2361 = vmatmul.mubr.bf16.gmra.mrb[0].mxu0 %v1196
        %v2362 = vpop.f32.mrb[0].mxu0
        %v2363 = vadd.f32 0.0, %v2362
        %v2364 = vpop.f32.mrb[0].mxu0
        %v2365 = vpop.f32.mrb[0].mxu0
        %v2366 = vadd.f32 0.0, %v2365
        %v2367 = vpop.f32.mrb[0].mxu0
        %2368 = vmatprep.mubr.bf16.mxu0 %v1215
        %2369 = vmatmul.mubr.bf16.gmra.mrb[0].mxu0 %v1214
        %v2370 = vpop.f32.mrb[0].mxu0
        %v2371 = vadd.f32 0.0, %v2370
        %v2372 = vpop.f32.mrb[0].mxu0
        %v2373 = vpop.f32.mrb[0].mxu0
        %v2374 = vadd.f32 0.0, %v2373
        %v2375 = vpop.f32.mrb[0].mxu0
        %2376 = vmatprep.mubr.bf16.mxu0 %v1233
        %2377 = vmatmul.mubr.bf16.gmra.mrb[0].mxu0 %v1232
        %v2378 = vpop.f32.mrb[0].mxu0
        %v2379 = vadd.f32 0.0, %v2378
        %v2380 = vpop.f32.mrb[0].mxu0
        %v2381 = vpop.f32.mrb[0].mxu0
        %v2382 = vadd.f32 0.0, %v2381
        %v2383 = vpop.f32.mrb[0].mxu0
        %2384 = vmatprep.mubr.bf16.mxu0 %v1251
        %2385 = vmatmul.mubr.bf16.gmra.mrb[0].mxu0 %v1250
        %v2386 = vpop.f32.mrb[0].mxu0
        %v2387 = vadd.f32 0.0, %v2386
        %v2388 = vpop.f32.mrb[0].mxu0
        %v2389 = vpop.f32.mrb[0].mxu0
        %v2390 = vadd.f32 0.0, %v2389
        %v2391 = vpop.f32.mrb[0].mxu0
        %2392 = vmatprep.mubr.bf16.mxu0 %v1269
        %2393 = vmatmul.mubr.bf16.gmra.mrb[0].mxu0 %v1268
        %v2394 = vpop.f32.mrb[0].mxu0
        %v2395 = vadd.f32 0.0, %v2394
        %v2396 = vpop.f32.mrb[0].mxu0
        %v2397 = vpop.f32.mrb[0].mxu0
        %v2398 = vadd.f32 0.0, %v2397
        %v2399 = vpop.f32.mrb[0].mxu0
        %2400 = vmatprep.mubr.bf16.mxu0 %v1287
        %2401 = vmatmul.mubr.bf16.gmra.mrb[0].mxu0 %v1286
        %v2402 = vpop.f32.mrb[0].mxu0
        %v2403 = vadd.f32 0.0, %v2402
        %v2404 = vpop.f32.mrb[0].mxu0
        %v2405 = vpop.f32.mrb[0].mxu0
        %v2406 = vadd.f32 0.0, %v2405
        %v2407 = vpop.f32.mrb[0].mxu0
        %2408 = vdwg.mxu0
        %2409 = vmatprep.subr.bf16.mxu0 0
        %2410 = vmatpush1.bf16.msra.mxu0 %v2040
        %2411 = vmatprep.subr.bf16.mxu0 0
        %2412 = vmatpush1.bf16.msra.mxu0 %v2041
        %2413 = vmatprep.subr.bf16.mxu0 0
        %2414 = vmatpush1.bf16.msra.mxu0 %v2042
        %2415 = vmatprep.subr.bf16.mxu0 0
        %2416 = vmatpush1.bf16.msra.mxu0 %v2043
        %2417 = vmatprep.subr.bf16.mxu0 0
        %2418 = vmatpush1.bf16.msra.mxu0 %v2044
        %2419 = vmatprep.subr.bf16.mxu0 0
        %2420 = vmatpush1.bf16.msra.mxu0 %v2045
        %2421 = vmatprep.subr.bf16.mxu0 0
        %2422 = vmatpush1.bf16.msra.mxu0 %v2046
        %2423 = vmatprep.subr.bf16.mxu0 0
        %2424 = vmatpush1.bf16.msra.mxu0 %v2047
        %2425 = vmatprep.subr.bf16.mxu0 0
        %2426 = vmatpush1.bf16.msra.mxu0 %v2048
        %2427 = vmatprep.subr.bf16.mxu0 0
        %2428 = vmatpush1.bf16.msra.mxu0 %v2049
        %2429 = vmatprep.subr.bf16.mxu0 0
        %2430 = vmatpush1.bf16.msra.mxu0 %v2050
        %2431 = vmatprep.subr.bf16.mxu0 0
        %2432 = vmatpush1.bf16.msra.mxu0 %v2051
        %2433 = vmatprep.subr.bf16.mxu0 0
        %2434 = vmatpush1.bf16.msra.mxu0 %v2052
        %2435 = vmatprep.subr.bf16.mxu0 0
        %2436 = vmatpush1.bf16.msra.mxu0 %v2053
        %2437 = vmatprep.subr.bf16.mxu0 0
        %2438 = vmatpush1.bf16.msra.mxu0 %v2054
        %2439 = vmatprep.subr.bf16.mxu0 0
        %2440 = vmatpush1.bf16.msra.mxu0 %v2055
        %2441 = vmatprep.mubr.bf16.mxu0 %v1163
        %2442 = vmatmul.mubr.bf16.gmra.mrb[0].mxu0 %v1162
        %v2443 = vpop.f32.mrb[0].mxu0
        %v2444 = vadd.f32 %v2347, %v2443
        %v2445 = vpop.f32.mrb[0].mxu0
        %v2446 = vpop.f32.mrb[0].mxu0
        %v2447 = vadd.f32 %v2350, %v2446
        %v2448 = vpop.f32.mrb[0].mxu0
        %2449 = vmatprep.mubr.bf16.mxu0 %v1181
        %2450 = vmatmul.mubr.bf16.gmra.mrb[0].mxu0 %v1180
        %v2451 = vpop.f32.mrb[0].mxu0
        %v2452 = vadd.f32 %v2355, %v2451
        %v2453 = vpop.f32.mrb[0].mxu0
        %v2454 = vpop.f32.mrb[0].mxu0
        %v2455 = vadd.f32 %v2358, %v2454
        %v2456 = vpop.f32.mrb[0].mxu0
        %2457 = vmatprep.mubr.bf16.mxu0 %v1199
        %2458 = vmatmul.mubr.bf16.gmra.mrb[0].mxu0 %v1198
        %v2459 = vpop.f32.mrb[0].mxu0
        %v2460 = vadd.f32 %v2363, %v2459
        %v2461 = vpop.f32.mrb[0].mxu0
        %v2462 = vpop.f32.mrb[0].mxu0
        %v2463 = vadd.f32 %v2366, %v2462
        %v2464 = vpop.f32.mrb[0].mxu0
        %2465 = vmatprep.mubr.bf16.mxu0 %v1217
        %2466 = vmatmul.mubr.bf16.gmra.mrb[0].mxu0 %v1216
        %v2467 = vpop.f32.mrb[0].mxu0
        %v2468 = vadd.f32 %v2371, %v2467
        %v2469 = vpop.f32.mrb[0].mxu0
        %v2470 = vpop.f32.mrb[0].mxu0
        %v2471 = vadd.f32 %v2374, %v2470
        %v2472 = vpop.f32.mrb[0].mxu0
        %2473 = vmatprep.mubr.bf16.mxu0 %v1235
        %2474 = vmatmul.mubr.bf16.gmra.mrb[0].mxu0 %v1234
        %v2475 = vpop.f32.mrb[0].mxu0
        %v2476 = vadd.f32 %v2379, %v2475
        %v2477 = vpop.f32.mrb[0].mxu0
        %v2478 = vpop.f32.mrb[0].mxu0
        %v2479 = vadd.f32 %v2382, %v2478
        %v2480 = vpop.f32.mrb[0].mxu0
        %2481 = vmatprep.mubr.bf16.mxu0 %v1253
        %2482 = vmatmul.mubr.bf16.gmra.mrb[0].mxu0 %v1252
        %v2483 = vpop.f32.mrb[0].mxu0
        %v2484 = vadd.f32 %v2387, %v2483
        %v2485 = vpop.f32.mrb[0].mxu0
        %v2486 = vpop.f32.mrb[0].mxu0
        %v2487 = vadd.f32 %v2390, %v2486
        %v2488 = vpop.f32.mrb[0].mxu0
        %2489 = vmatprep.mubr.bf16.mxu0 %v1271
        %2490 = vmatmul.mubr.bf16.gmra.mrb[0].mxu0 %v1270
        %v2491 = vpop.f32.mrb[0].mxu0
        %v2492 = vadd.f32 %v2395, %v2491
        %v2493 = vpop.f32.mrb[0].mxu0
        %v2494 = vpop.f32.mrb[0].mxu0
        %v2495 = vadd.f32 %v2398, %v2494
        %v2496 = vpop.f32.mrb[0].mxu0
        %2497 = vmatprep.mubr.bf16.mxu0 %v1289
        %2498 = vmatmul.mubr.bf16.gmra.mrb[0].mxu0 %v1288
        %v2499 = vpop.f32.mrb[0].mxu0
        %v2500 = vadd.f32 %v2403, %v2499
        %v2501 = vpop.f32.mrb[0].mxu0
        %v2502 = vpop.f32.mrb[0].mxu0
        %v2503 = vadd.f32 %v2406, %v2502
        %v2504 = vpop.f32.mrb[0].mxu0
        %2505 = vdwg.mxu0
        %2506 = vmatprep.subr.bf16.mxu0 0
        %2507 = vmatpush1.bf16.msra.mxu0 %v2056
        %2508 = vmatprep.subr.bf16.mxu0 0
        %2509 = vmatpush1.bf16.msra.mxu0 %v2057
        %2510 = vmatprep.subr.bf16.mxu0 0
        %2511 = vmatpush1.bf16.msra.mxu0 %v2058
        %2512 = vmatprep.subr.bf16.mxu0 0
        %2513 = vmatpush1.bf16.msra.mxu0 %v2059
        %2514 = vmatprep.subr.bf16.mxu0 0
        %2515 = vmatpush1.bf16.msra.mxu0 %v2060
        %2516 = vmatprep.subr.bf16.mxu0 0
        %2517 = vmatpush1.bf16.msra.mxu0 %v2061
        %2518 = vmatprep.subr.bf16.mxu0 0
        %2519 = vmatpush1.bf16.msra.mxu0 %v2062
        %2520 = vmatprep.subr.bf16.mxu0 0
        %2521 = vmatpush1.bf16.msra.mxu0 %v2063
        %2522 = vmatprep.subr.bf16.mxu0 0
        %2523 = vmatpush1.bf16.msra.mxu0 %v2064
        %2524 = vmatprep.subr.bf16.mxu0 0
        %2525 = vmatpush1.bf16.msra.mxu0 %v2065
        %2526 = vmatprep.subr.bf16.mxu0 0
        %2527 = vmatpush1.bf16.msra.mxu0 %v2066
        %2528 = vmatprep.subr.bf16.mxu0 0
        %2529 = vmatpush1.bf16.msra.mxu0 %v2067
        %2530 = vmatprep.subr.bf16.mxu0 0
        %2531 = vmatpush1.bf16.msra.mxu0 %v2068
        %2532 = vmatprep.subr.bf16.mxu0 0
        %2533 = vmatpush1.bf16.msra.mxu0 %v2069
        %2534 = vmatprep.subr.bf16.mxu0 0
        %2535 = vmatpush1.bf16.msra.mxu0 %v2070
        %2536 = vmatprep.subr.bf16.mxu0 0
        %2537 = vmatpush1.bf16.msra.mxu0 %v2071
        %2538 = vmatprep.mubr.bf16.mxu0 %v1165
        %2539 = vmatmul.mubr.bf16.gmra.mrb[0].mxu0 %v1164
        %v2540 = vpop.f32.mrb[0].mxu0
        %v2541 = vadd.f32 %v2444, %v2540
        %v2542 = vpop.f32.mrb[0].mxu0
        %v2543 = vpop.f32.mrb[0].mxu0
        %v2544 = vadd.f32 %v2447, %v2543
        %v2545 = vpop.f32.mrb[0].mxu0
        %2546 = vmatprep.mubr.bf16.mxu0 %v1183
        %2547 = vmatmul.mubr.bf16.gmra.mrb[0].mxu0 %v1182
        %v2548 = vpop.f32.mrb[0].mxu0
        %v2549 = vadd.f32 %v2452, %v2548
        %v2550 = vpop.f32.mrb[0].mxu0
        %v2551 = vpop.f32.mrb[0].mxu0
        %v2552 = vadd.f32 %v2455, %v2551
        %v2553 = vpop.f32.mrb[0].mxu0
        %2554 = vmatprep.mubr.bf16.mxu0 %v1201
        %2555 = vmatmul.mubr.bf16.gmra.mrb[0].mxu0 %v1200
        %v2556 = vpop.f32.mrb[0].mxu0
        %v2557 = vadd.f32 %v2460, %v2556
        %v2558 = vpop.f32.mrb[0].mxu0
        %v2559 = vpop.f32.mrb[0].mxu0
        %v2560 = vadd.f32 %v2463, %v2559
        %v2561 = vpop.f32.mrb[0].mxu0
        %2562 = vmatprep.mubr.bf16.mxu0 %v1219
        %2563 = vmatmul.mubr.bf16.gmra.mrb[0].mxu0 %v1218
        %v2564 = vpop.f32.mrb[0].mxu0
        %v2565 = vadd.f32 %v2468, %v2564
        %v2566 = vpop.f32.mrb[0].mxu0
        %v2567 = vpop.f32.mrb[0].mxu0
        %v2568 = vadd.f32 %v2471, %v2567
        %v2569 = vpop.f32.mrb[0].mxu0
        %2570 = vmatprep.mubr.bf16.mxu0 %v1237
        %2571 = vmatmul.mubr.bf16.gmra.mrb[0].mxu0 %v1236
        %v2572 = vpop.f32.mrb[0].mxu0
        %v2573 = vadd.f32 %v2476, %v2572
        %v2574 = vpop.f32.mrb[0].mxu0
        %v2575 = vpop.f32.mrb[0].mxu0
        %v2576 = vadd.f32 %v2479, %v2575
        %v2577 = vpop.f32.mrb[0].mxu0
        %2578 = vmatprep.mubr.bf16.mxu0 %v1255
        %2579 = vmatmul.mubr.bf16.gmra.mrb[0].mxu0 %v1254
        %v2580 = vpop.f32.mrb[0].mxu0
        %v2581 = vadd.f32 %v2484, %v2580
        %v2582 = vpop.f32.mrb[0].mxu0
        %v2583 = vpop.f32.mrb[0].mxu0
        %v2584 = vadd.f32 %v2487, %v2583
        %v2585 = vpop.f32.mrb[0].mxu0
        %2586 = vmatprep.mubr.bf16.mxu0 %v1273
        %2587 = vmatmul.mubr.bf16.gmra.mrb[0].mxu0 %v1272
        %v2588 = vpop.f32.mrb[0].mxu0
        %v2589 = vadd.f32 %v2492, %v2588
        %v2590 = vpop.f32.mrb[0].mxu0
        %v2591 = vpop.f32.mrb[0].mxu0
        %v2592 = vadd.f32 %v2495, %v2591
        %v2593 = vpop.f32.mrb[0].mxu0
        %2594 = vmatprep.mubr.bf16.mxu0 %v1291
        %2595 = vmatmul.mubr.bf16.gmra.mrb[0].mxu0 %v1290
        %v2596 = vpop.f32.mrb[0].mxu0
        %v2597 = vadd.f32 %v2500, %v2596
        %v2598 = vpop.f32.mrb[0].mxu0
        %v2599 = vpop.f32.mrb[0].mxu0
        %v2600 = vadd.f32 %v2503, %v2599
        %v2601 = vpop.f32.mrb[0].mxu0
        %2602 = vdwg.mxu0
        %2603 = vmatprep.subr.bf16.mxu0 0
        %2604 = vmatpush1.bf16.msra.mxu0 %v2072
        %2605 = vmatprep.subr.bf16.mxu0 0
        %2606 = vmatpush1.bf16.msra.mxu0 %v2073
        %2607 = vmatprep.subr.bf16.mxu0 0
        %2608 = vmatpush1.bf16.msra.mxu0 %v2074
        %2609 = vmatprep.subr.bf16.mxu0 0
        %2610 = vmatpush1.bf16.msra.mxu0 %v2075
        %2611 = vmatprep.subr.bf16.mxu0 0
        %2612 = vmatpush1.bf16.msra.mxu0 %v2076
        %2613 = vmatprep.subr.bf16.mxu0 0
        %2614 = vmatpush1.bf16.msra.mxu0 %v2077
        %2615 = vmatprep.subr.bf16.mxu0 0
        %2616 = vmatpush1.bf16.msra.mxu0 %v2078
        %2617 = vmatprep.subr.bf16.mxu0 0
        %2618 = vmatpush1.bf16.msra.mxu0 %v2079
        %2619 = vmatprep.subr.bf16.mxu0 0
        %2620 = vmatpush1.bf16.msra.mxu0 %v2080
        %2621 = vmatprep.subr.bf16.mxu0 0
        %2622 = vmatpush1.bf16.msra.mxu0 %v2081
        %2623 = vmatprep.subr.bf16.mxu0 0
        %2624 = vmatpush1.bf16.msra.mxu0 %v2082
        %2625 = vmatprep.subr.bf16.mxu0 0
        %2626 = vmatpush1.bf16.msra.mxu0 %v2083
        %2627 = vmatprep.subr.bf16.mxu0 0
        %2628 = vmatpush1.bf16.msra.mxu0 %v2084
        %2629 = vmatprep.subr.bf16.mxu0 0
        %2630 = vmatpush1.bf16.msra.mxu0 %v2085
        %2631 = vmatprep.subr.bf16.mxu0 0
        %2632 = vmatpush1.bf16.msra.mxu0 %v2086
        %2633 = vmatprep.subr.bf16.mxu0 0
        %2634 = vmatpush1.bf16.msra.mxu0 %v2087
        %2635 = vmatprep.mubr.bf16.mxu0 %v1167
        %2636 = vmatmul.mubr.bf16.gmra.mrb[0].mxu0 %v1166
        %v2637 = vpop.f32.mrb[0].mxu0
        %v2638 = vadd.f32 %v2541, %v2637
        %v2639 = vpop.f32.mrb[0].mxu0
        %v2640 = vpop.f32.mrb[0].mxu0
        %v2641 = vadd.f32 %v2544, %v2640
        %v2642 = vpop.f32.mrb[0].mxu0
        %2643 = vmatprep.mubr.bf16.mxu0 %v1185
        %2644 = vmatmul.mubr.bf16.gmra.mrb[0].mxu0 %v1184
        %v2645 = vpop.f32.mrb[0].mxu0
        %v2646 = vadd.f32 %v2549, %v2645
        %v2647 = vpop.f32.mrb[0].mxu0
        %v2648 = vpop.f32.mrb[0].mxu0
        %v2649 = vadd.f32 %v2552, %v2648
        %v2650 = vpop.f32.mrb[0].mxu0
        %2651 = vmatprep.mubr.bf16.mxu0 %v1203
        %2652 = vmatmul.mubr.bf16.gmra.mrb[0].mxu0 %v1202
        %v2653 = vpop.f32.mrb[0].mxu0
        %v2654 = vadd.f32 %v2557, %v2653
        %v2655 = vpop.f32.mrb[0].mxu0
        %v2656 = vpop.f32.mrb[0].mxu0
        %v2657 = vadd.f32 %v2560, %v2656
        %v2658 = vpop.f32.mrb[0].mxu0
        %2659 = vmatprep.mubr.bf16.mxu0 %v1221
        %2660 = vmatmul.mubr.bf16.gmra.mrb[0].mxu0 %v1220
        %v2661 = vpop.f32.mrb[0].mxu0
        %v2662 = vadd.f32 %v2565, %v2661
        %v2663 = vpop.f32.mrb[0].mxu0
        %v2664 = vpop.f32.mrb[0].mxu0
        %v2665 = vadd.f32 %v2568, %v2664
        %v2666 = vpop.f32.mrb[0].mxu0
        %2667 = vmatprep.mubr.bf16.mxu0 %v1239
        %2668 = vmatmul.mubr.bf16.gmra.mrb[0].mxu0 %v1238
        %v2669 = vpop.f32.mrb[0].mxu0
        %v2670 = vadd.f32 %v2573, %v2669
        %v2671 = vpop.f32.mrb[0].mxu0
        %v2672 = vpop.f32.mrb[0].mxu0
        %v2673 = vadd.f32 %v2576, %v2672
        %v2674 = vpop.f32.mrb[0].mxu0
        %2675 = vmatprep.mubr.bf16.mxu0 %v1257
        %2676 = vmatmul.mubr.bf16.gmra.mrb[0].mxu0 %v1256
        %v2677 = vpop.f32.mrb[0].mxu0
        %v2678 = vadd.f32 %v2581, %v2677
        %v2679 = vpop.f32.mrb[0].mxu0
        %v2680 = vpop.f32.mrb[0].mxu0
        %v2681 = vadd.f32 %v2584, %v2680
        %v2682 = vpop.f32.mrb[0].mxu0
        %2683 = vmatprep.mubr.bf16.mxu0 %v1275
        %2684 = vmatmul.mubr.bf16.gmra.mrb[0].mxu0 %v1274
        %v2685 = vpop.f32.mrb[0].mxu0
        %v2686 = vadd.f32 %v2589, %v2685
        %v2687 = vpop.f32.mrb[0].mxu0
        %v2688 = vpop.f32.mrb[0].mxu0
        %v2689 = vadd.f32 %v2592, %v2688
        %v2690 = vpop.f32.mrb[0].mxu0
        %2691 = vmatprep.mubr.bf16.mxu0 %v1293
        %2692 = vmatmul.mubr.bf16.gmra.mrb[0].mxu0 %v1292
        %v2693 = vpop.f32.mrb[0].mxu0
        %v2694 = vadd.f32 %v2597, %v2693
        %v2695 = vpop.f32.mrb[0].mxu0
        %v2696 = vpop.f32.mrb[0].mxu0
        %v2697 = vadd.f32 %v2600, %v2696
        %v2698 = vpop.f32.mrb[0].mxu0
        %2699 = vdwg.mxu0
        %2700 = vmatprep.subr.bf16.mxu0 0
        %2701 = vmatpush1.bf16.msra.mxu0 %v2088
        %2702 = vmatprep.subr.bf16.mxu0 0
        %2703 = vmatpush1.bf16.msra.mxu0 %v2089
        %2704 = vmatprep.subr.bf16.mxu0 0
        %2705 = vmatpush1.bf16.msra.mxu0 %v2090
        %2706 = vmatprep.subr.bf16.mxu0 0
        %2707 = vmatpush1.bf16.msra.mxu0 %v2091
        %2708 = vmatprep.subr.bf16.mxu0 0
        %2709 = vmatpush1.bf16.msra.mxu0 %v2092
        %2710 = vmatprep.subr.bf16.mxu0 0
        %2711 = vmatpush1.bf16.msra.mxu0 %v2093
        %2712 = vmatprep.subr.bf16.mxu0 0
        %2713 = vmatpush1.bf16.msra.mxu0 %v2094
        %2714 = vmatprep.subr.bf16.mxu0 0
        %2715 = vmatpush1.bf16.msra.mxu0 %v2095
        %2716 = vmatprep.subr.bf16.mxu0 0
        %2717 = vmatpush1.bf16.msra.mxu0 %v2096
        %2718 = vmatprep.subr.bf16.mxu0 0
        %2719 = vmatpush1.bf16.msra.mxu0 %v2097
        %2720 = vmatprep.subr.bf16.mxu0 0
        %2721 = vmatpush1.bf16.msra.mxu0 %v2098
        %2722 = vmatprep.subr.bf16.mxu0 0
        %2723 = vmatpush1.bf16.msra.mxu0 %v2099
        %2724 = vmatprep.subr.bf16.mxu0 0
        %2725 = vmatpush1.bf16.msra.mxu0 %v2100
        %2726 = vmatprep.subr.bf16.mxu0 0
        %2727 = vmatpush1.bf16.msra.mxu0 %v2101
        %2728 = vmatprep.subr.bf16.mxu0 0
        %2729 = vmatpush1.bf16.msra.mxu0 %v2102
        %2730 = vmatprep.subr.bf16.mxu0 0
        %2731 = vmatpush1.bf16.msra.mxu0 %v2103
        %2732 = vmatprep.mubr.bf16.mxu0 %v1169
        %2733 = vmatmul.mubr.bf16.gmra.mrb[0].mxu0 %v1168
        %v2734 = vpop.f32.mrb[0].mxu0
        %v2735 = vadd.f32 %v2638, %v2734
        %v2736 = vpop.f32.mrb[0].mxu0
        %v2737 = vpop.f32.mrb[0].mxu0
        %v2738 = vadd.f32 %v2641, %v2737
        %v2739 = vpop.f32.mrb[0].mxu0
        %2740 = vmatprep.mubr.bf16.mxu0 %v1187
        %2741 = vmatmul.mubr.bf16.gmra.mrb[0].mxu0 %v1186
        %v2742 = vpop.f32.mrb[0].mxu0
        %v2743 = vadd.f32 %v2646, %v2742
        %v2744 = vpop.f32.mrb[0].mxu0
        %v2745 = vpop.f32.mrb[0].mxu0
        %v2746 = vadd.f32 %v2649, %v2745
        %v2747 = vpop.f32.mrb[0].mxu0
        %2748 = vmatprep.mubr.bf16.mxu0 %v1205
        %2749 = vmatmul.mubr.bf16.gmra.mrb[0].mxu0 %v1204
        %v2750 = vpop.f32.mrb[0].mxu0
        %v2751 = vadd.f32 %v2654, %v2750
        %v2752 = vpop.f32.mrb[0].mxu0
        %v2753 = vpop.f32.mrb[0].mxu0
        %v2754 = vadd.f32 %v2657, %v2753
        %v2755 = vpop.f32.mrb[0].mxu0
        %2756 = vmatprep.mubr.bf16.mxu0 %v1223
        %2757 = vmatmul.mubr.bf16.gmra.mrb[0].mxu0 %v1222
        %v2758 = vpop.f32.mrb[0].mxu0
        %v2759 = vadd.f32 %v2662, %v2758
        %v2760 = vpop.f32.mrb[0].mxu0
        %v2761 = vpop.f32.mrb[0].mxu0
        %v2762 = vadd.f32 %v2665, %v2761
        %v2763 = vpop.f32.mrb[0].mxu0
        %2764 = vmatprep.mubr.bf16.mxu0 %v1241
        %2765 = vmatmul.mubr.bf16.gmra.mrb[0].mxu0 %v1240
        %v2766 = vpop.f32.mrb[0].mxu0
        %v2767 = vadd.f32 %v2670, %v2766
        %v2768 = vpop.f32.mrb[0].mxu0
        %v2769 = vpop.f32.mrb[0].mxu0
        %v2770 = vadd.f32 %v2673, %v2769
        %v2771 = vpop.f32.mrb[0].mxu0
        %2772 = vmatprep.mubr.bf16.mxu0 %v1259
        %2773 = vmatmul.mubr.bf16.gmra.mrb[0].mxu0 %v1258
        %v2774 = vpop.f32.mrb[0].mxu0
        %v2775 = vadd.f32 %v2678, %v2774
        %v2776 = vpop.f32.mrb[0].mxu0
        %v2777 = vpop.f32.mrb[0].mxu0
        %v2778 = vadd.f32 %v2681, %v2777
        %v2779 = vpop.f32.mrb[0].mxu0
        %2780 = vmatprep.mubr.bf16.mxu0 %v1277
        %2781 = vmatmul.mubr.bf16.gmra.mrb[0].mxu0 %v1276
        %v2782 = vpop.f32.mrb[0].mxu0
        %v2783 = vadd.f32 %v2686, %v2782
        %v2784 = vpop.f32.mrb[0].mxu0
        %v2785 = vpop.f32.mrb[0].mxu0
        %v2786 = vadd.f32 %v2689, %v2785
        %v2787 = vpop.f32.mrb[0].mxu0
        %2788 = vmatprep.mubr.bf16.mxu0 %v1295
        %2789 = vmatmul.mubr.bf16.gmra.mrb[0].mxu0 %v1294
        %v2790 = vpop.f32.mrb[0].mxu0
        %v2791 = vadd.f32 %v2694, %v2790
        %v2792 = vpop.f32.mrb[0].mxu0
        %v2793 = vpop.f32.mrb[0].mxu0
        %v2794 = vadd.f32 %v2697, %v2793
        %v2795 = vpop.f32.mrb[0].mxu0
        %2796 = vdwg.mxu0
        %2797 = vmatprep.subr.bf16.mxu0 0
        %2798 = vmatpush1.bf16.msra.mxu0 %v2104
        %2799 = vmatprep.subr.bf16.mxu0 0
        %2800 = vmatpush1.bf16.msra.mxu0 %v2105
        %2801 = vmatprep.subr.bf16.mxu0 0
        %2802 = vmatpush1.bf16.msra.mxu0 %v2106
        %2803 = vmatprep.subr.bf16.mxu0 0
        %2804 = vmatpush1.bf16.msra.mxu0 %v2107
        %2805 = vmatprep.subr.bf16.mxu0 0
        %2806 = vmatpush1.bf16.msra.mxu0 %v2108
        %2807 = vmatprep.subr.bf16.mxu0 0
        %2808 = vmatpush1.bf16.msra.mxu0 %v2109
        %2809 = vmatprep.subr.bf16.mxu0 0
        %2810 = vmatpush1.bf16.msra.mxu0 %v2110
        %2811 = vmatprep.subr.bf16.mxu0 0
        %2812 = vmatpush1.bf16.msra.mxu0 %v2111
        %2813 = vmatprep.subr.bf16.mxu0 0
        %2814 = vmatpush1.bf16.msra.mxu0 %v2112
        %2815 = vmatprep.subr.bf16.mxu0 0
        %2816 = vmatpush1.bf16.msra.mxu0 %v2113
        %2817 = vmatprep.subr.bf16.mxu0 0
        %2818 = vmatpush1.bf16.msra.mxu0 %v2114
        %2819 = vmatprep.subr.bf16.mxu0 0
        %2820 = vmatpush1.bf16.msra.mxu0 %v2115
        %2821 = vmatprep.subr.bf16.mxu0 0
        %2822 = vmatpush1.bf16.msra.mxu0 %v2116
        %2823 = vmatprep.subr.bf16.mxu0 0
        %2824 = vmatpush1.bf16.msra.mxu0 %v2117
        %2825 = vmatprep.subr.bf16.mxu0 0
        %2826 = vmatpush1.bf16.msra.mxu0 %v2118
        %2827 = vmatprep.subr.bf16.mxu0 0
        %2828 = vmatpush1.bf16.msra.mxu0 %v2119
        %2829 = vmatprep.mubr.bf16.mxu0 %v1171
        %2830 = vmatmul.mubr.bf16.gmra.mrb[0].mxu0 %v1170
        %v2831 = vpop.f32.mrb[0].mxu0
        %v2832 = vadd.f32 %v2735, %v2831
        %v2833 = vpop.f32.mrb[0].mxu0
        %v2834 = vpop.f32.mrb[0].mxu0
        %v2835 = vadd.f32 %v2738, %v2834
        %v2836 = vpop.f32.mrb[0].mxu0
        %2837 = vmatprep.mubr.bf16.mxu0 %v1189
        %2838 = vmatmul.mubr.bf16.gmra.mrb[0].mxu0 %v1188
        %v2839 = vpop.f32.mrb[0].mxu0
        %v2840 = vadd.f32 %v2743, %v2839
        %v2841 = vpop.f32.mrb[0].mxu0
        %v2842 = vpop.f32.mrb[0].mxu0
        %v2843 = vadd.f32 %v2746, %v2842
        %v2844 = vpop.f32.mrb[0].mxu0
        %2845 = vmatprep.mubr.bf16.mxu0 %v1207
        %2846 = vmatmul.mubr.bf16.gmra.mrb[0].mxu0 %v1206
        %v2847 = vpop.f32.mrb[0].mxu0
        %v2848 = vadd.f32 %v2751, %v2847
        %v2849 = vpop.f32.mrb[0].mxu0
        %v2850 = vpop.f32.mrb[0].mxu0
        %v2851 = vadd.f32 %v2754, %v2850
        %v2852 = vpop.f32.mrb[0].mxu0
        %2853 = vmatprep.mubr.bf16.mxu0 %v1225
        %2854 = vmatmul.mubr.bf16.gmra.mrb[0].mxu0 %v1224
        %v2855 = vpop.f32.mrb[0].mxu0
        %v2856 = vadd.f32 %v2759, %v2855
        %v2857 = vpop.f32.mrb[0].mxu0
        %v2858 = vpop.f32.mrb[0].mxu0
        %v2859 = vadd.f32 %v2762, %v2858
        %v2860 = vpop.f32.mrb[0].mxu0
        %2861 = vmatprep.mubr.bf16.mxu0 %v1243
        %2862 = vmatmul.mubr.bf16.gmra.mrb[0].mxu0 %v1242
        %v2863 = vpop.f32.mrb[0].mxu0
        %v2864 = vadd.f32 %v2767, %v2863
        %v2865 = vpop.f32.mrb[0].mxu0
        %v2866 = vpop.f32.mrb[0].mxu0
        %v2867 = vadd.f32 %v2770, %v2866
        %v2868 = vpop.f32.mrb[0].mxu0
        %2869 = vmatprep.mubr.bf16.mxu0 %v1261
        %2870 = vmatmul.mubr.bf16.gmra.mrb[0].mxu0 %v1260
        %v2871 = vpop.f32.mrb[0].mxu0
        %v2872 = vadd.f32 %v2775, %v2871
        %v2873 = vpop.f32.mrb[0].mxu0
        %v2874 = vpop.f32.mrb[0].mxu0
        %v2875 = vadd.f32 %v2778, %v2874
        %v2876 = vpop.f32.mrb[0].mxu0
        %2877 = vmatprep.mubr.bf16.mxu0 %v1279
        %2878 = vmatmul.mubr.bf16.gmra.mrb[0].mxu0 %v1278
        %v2879 = vpop.f32.mrb[0].mxu0
        %v2880 = vadd.f32 %v2783, %v2879
        %v2881 = vpop.f32.mrb[0].mxu0
        %v2882 = vpop.f32.mrb[0].mxu0
        %v2883 = vadd.f32 %v2786, %v2882
        %v2884 = vpop.f32.mrb[0].mxu0
        %2885 = vmatprep.mubr.bf16.mxu0 %v1297
        %2886 = vmatmul.mubr.bf16.gmra.mrb[0].mxu0 %v1296
        %v2887 = vpop.f32.mrb[0].mxu0
        %v2888 = vadd.f32 %v2791, %v2887
        %v2889 = vpop.f32.mrb[0].mxu0
        %v2890 = vpop.f32.mrb[0].mxu0
        %v2891 = vadd.f32 %v2794, %v2890
        %v2892 = vpop.f32.mrb[0].mxu0
        %2893 = vdwg.mxu0
        %2894 = vmatprep.subr.bf16.mxu0 0
        %2895 = vmatpush1.bf16.msra.mxu0 %v2120
        %2896 = vmatprep.subr.bf16.mxu0 0
        %2897 = vmatpush1.bf16.msra.mxu0 %v2121
        %2898 = vmatprep.subr.bf16.mxu0 0
        %2899 = vmatpush1.bf16.msra.mxu0 %v2122
        %2900 = vmatprep.subr.bf16.mxu0 0
        %2901 = vmatpush1.bf16.msra.mxu0 %v2123
        %2902 = vmatprep.subr.bf16.mxu0 0
        %2903 = vmatpush1.bf16.msra.mxu0 %v2124
        %2904 = vmatprep.subr.bf16.mxu0 0
        %2905 = vmatpush1.bf16.msra.mxu0 %v2125
        %2906 = vmatprep.subr.bf16.mxu0 0
        %2907 = vmatpush1.bf16.msra.mxu0 %v2126
        %2908 = vmatprep.subr.bf16.mxu0 0
        %2909 = vmatpush1.bf16.msra.mxu0 %v2127
        %2910 = vmatprep.subr.bf16.mxu0 0
        %2911 = vmatpush1.bf16.msra.mxu0 %v2128
        %2912 = vmatprep.subr.bf16.mxu0 0
        %2913 = vmatpush1.bf16.msra.mxu0 %v2129
        %2914 = vmatprep.subr.bf16.mxu0 0
        %2915 = vmatpush1.bf16.msra.mxu0 %v2130
        %2916 = vmatprep.subr.bf16.mxu0 0
        %2917 = vmatpush1.bf16.msra.mxu0 %v2131
        %2918 = vmatprep.subr.bf16.mxu0 0
        %2919 = vmatpush1.bf16.msra.mxu0 %v2132
        %2920 = vmatprep.subr.bf16.mxu0 0
        %2921 = vmatpush1.bf16.msra.mxu0 %v2133
        %2922 = vmatprep.subr.bf16.mxu0 0
        %2923 = vmatpush1.bf16.msra.mxu0 %v2134
        %2924 = vmatprep.subr.bf16.mxu0 0
        %2925 = vmatpush1.bf16.msra.mxu0 %v2135
        %2926 = vmatprep.mubr.bf16.mxu0 %v1173
        %2927 = vmatmul.mubr.bf16.gmra.mrb[0].mxu0 %v1172
        %v2928 = vpop.f32.mrb[0].mxu0
        %v2929 = vadd.f32 %v2832, %v2928
        %v2930 = vpop.f32.mrb[0].mxu0
        %v2931 = vpop.f32.mrb[0].mxu0
        %v2932 = vadd.f32 %v2835, %v2931
        %v2933 = vpop.f32.mrb[0].mxu0
        %2934 = vmatprep.mubr.bf16.mxu0 %v1191
        %2935 = vmatmul.mubr.bf16.gmra.mrb[0].mxu0 %v1190
        %v2936 = vpop.f32.mrb[0].mxu0
        %v2937 = vadd.f32 %v2840, %v2936
        %v2938 = vpop.f32.mrb[0].mxu0
        %v2939 = vpop.f32.mrb[0].mxu0
        %v2940 = vadd.f32 %v2843, %v2939
        %v2941 = vpop.f32.mrb[0].mxu0
        %2942 = vmatprep.mubr.bf16.mxu0 %v1209
        %2943 = vmatmul.mubr.bf16.gmra.mrb[0].mxu0 %v1208
        %v2944 = vpop.f32.mrb[0].mxu0
        %v2945 = vadd.f32 %v2848, %v2944
        %v2946 = vpop.f32.mrb[0].mxu0
        %v2947 = vpop.f32.mrb[0].mxu0
        %v2948 = vadd.f32 %v2851, %v2947
        %v2949 = vpop.f32.mrb[0].mxu0
        %2950 = vmatprep.mubr.bf16.mxu0 %v1227
        %2951 = vmatmul.mubr.bf16.gmra.mrb[0].mxu0 %v1226
        %v2952 = vpop.f32.mrb[0].mxu0
        %v2953 = vadd.f32 %v2856, %v2952
        %v2954 = vpop.f32.mrb[0].mxu0
        %v2955 = vpop.f32.mrb[0].mxu0
        %v2956 = vadd.f32 %v2859, %v2955
        %v2957 = vpop.f32.mrb[0].mxu0
        %2958 = vmatprep.mubr.bf16.mxu0 %v1245
        %2959 = vmatmul.mubr.bf16.gmra.mrb[0].mxu0 %v1244
        %v2960 = vpop.f32.mrb[0].mxu0
        %v2961 = vadd.f32 %v2864, %v2960
        %v2962 = vpop.f32.mrb[0].mxu0
        %v2963 = vpop.f32.mrb[0].mxu0
        %v2964 = vadd.f32 %v2867, %v2963
        %v2965 = vpop.f32.mrb[0].mxu0
        %2966 = vmatprep.mubr.bf16.mxu0 %v1263
        %2967 = vmatmul.mubr.bf16.gmra.mrb[0].mxu0 %v1262
        %v2968 = vpop.f32.mrb[0].mxu0
        %v2969 = vadd.f32 %v2872, %v2968
        %v2970 = vpop.f32.mrb[0].mxu0
        %v2971 = vpop.f32.mrb[0].mxu0
        %v2972 = vadd.f32 %v2875, %v2971
        %v2973 = vpop.f32.mrb[0].mxu0
        %2974 = vmatprep.mubr.bf16.mxu0 %v1281
        %2975 = vmatmul.mubr.bf16.gmra.mrb[0].mxu0 %v1280
        %v2976 = vpop.f32.mrb[0].mxu0
        %v2977 = vadd.f32 %v2880, %v2976
        %v2978 = vpop.f32.mrb[0].mxu0
        %v2979 = vpop.f32.mrb[0].mxu0
        %v2980 = vadd.f32 %v2883, %v2979
        %v2981 = vpop.f32.mrb[0].mxu0
        %2982 = vmatprep.mubr.bf16.mxu0 %v1299
        %2983 = vmatmul.mubr.bf16.gmra.mrb[0].mxu0 %v1298
        %v2984 = vpop.f32.mrb[0].mxu0
        %v2985 = vadd.f32 %v2888, %v2984
        %v2986 = vpop.f32.mrb[0].mxu0
        %v2987 = vpop.f32.mrb[0].mxu0
        %v2988 = vadd.f32 %v2891, %v2987
        %v2989 = vpop.f32.mrb[0].mxu0
        %2990 = vdwg.mxu0
        %2991 = vmatprep.subr.bf16.mxu0 0
        %2992 = vmatpush1.bf16.msra.mxu0 %v2136
        %2993 = vmatprep.subr.bf16.mxu0 0
        %2994 = vmatpush1.bf16.msra.mxu0 %v2137
        %2995 = vmatprep.subr.bf16.mxu0 0
        %2996 = vmatpush1.bf16.msra.mxu0 %v2138
        %2997 = vmatprep.subr.bf16.mxu0 0
        %2998 = vmatpush1.bf16.msra.mxu0 %v2139
        %2999 = vmatprep.subr.bf16.mxu0 0
        %3000 = vmatpush1.bf16.msra.mxu0 %v2140
        %3001 = vmatprep.subr.bf16.mxu0 0
        %3002 = vmatpush1.bf16.msra.mxu0 %v2141
        %3003 = vmatprep.subr.bf16.mxu0 0
        %3004 = vmatpush1.bf16.msra.mxu0 %v2142
        %3005 = vmatprep.subr.bf16.mxu0 0
        %3006 = vmatpush1.bf16.msra.mxu0 %v2143
        %3007 = vmatprep.subr.bf16.mxu0 0
        %3008 = vmatpush1.bf16.msra.mxu0 %v2144
        %3009 = vmatprep.subr.bf16.mxu0 0
        %3010 = vmatpush1.bf16.msra.mxu0 %v2145
        %3011 = vmatprep.subr.bf16.mxu0 0
        %3012 = vmatpush1.bf16.msra.mxu0 %v2146
        %3013 = vmatprep.subr.bf16.mxu0 0
        %3014 = vmatpush1.bf16.msra.mxu0 %v2147
        %3015 = vmatprep.subr.bf16.mxu0 0
        %3016 = vmatpush1.bf16.msra.mxu0 %v2148
        %3017 = vmatprep.subr.bf16.mxu0 0
        %3018 = vmatpush1.bf16.msra.mxu0 %v2149
        %3019 = vmatprep.subr.bf16.mxu0 0
        %3020 = vmatpush1.bf16.msra.mxu0 %v2150
        %3021 = vmatprep.subr.bf16.mxu0 0
        %3022 = vmatpush1.bf16.msra.mxu0 %v2151
        %3023 = vmatprep.mubr.bf16.mxu0 %v1175
        %3024 = vmatmul.mubr.bf16.gmra.mrb[0].mxu0 %v1174
        %v3025 = vpop.f32.mrb[0].mxu0
        %v3026 = vadd.f32 %v2929, %v3025
        %v3027 = vpop.f32.mrb[0].mxu0
        %v3028 = vpop.f32.mrb[0].mxu0
        %v3029 = vadd.f32 %v2932, %v3028
        %v3030 = vpop.f32.mrb[0].mxu0
        %3031 = vmatprep.mubr.bf16.mxu0 %v1193
        %3032 = vmatmul.mubr.bf16.gmra.mrb[0].mxu0 %v1192
        %v3033 = vpop.f32.mrb[0].mxu0
        %v3034 = vadd.f32 %v2937, %v3033
        %v3035 = vpop.f32.mrb[0].mxu0
        %v3036 = vpop.f32.mrb[0].mxu0
        %v3037 = vadd.f32 %v2940, %v3036
        %v3038 = vpop.f32.mrb[0].mxu0
        %3039 = vmatprep.mubr.bf16.mxu0 %v1211
        %3040 = vmatmul.mubr.bf16.gmra.mrb[0].mxu0 %v1210
        %v3041 = vpop.f32.mrb[0].mxu0
        %v3042 = vadd.f32 %v2945, %v3041
        %v3043 = vpop.f32.mrb[0].mxu0
        %v3044 = vpop.f32.mrb[0].mxu0
        %v3045 = vadd.f32 %v2948, %v3044
        %v3046 = vpop.f32.mrb[0].mxu0
        %3047 = vmatprep.mubr.bf16.mxu0 %v1229
        %3048 = vmatmul.mubr.bf16.gmra.mrb[0].mxu0 %v1228
        %v3049 = vpop.f32.mrb[0].mxu0
        %v3050 = vadd.f32 %v2953, %v3049
        %v3051 = vpop.f32.mrb[0].mxu0
        %v3052 = vpop.f32.mrb[0].mxu0
        %v3053 = vadd.f32 %v2956, %v3052
        %v3054 = vpop.f32.mrb[0].mxu0
        %3055 = vmatprep.mubr.bf16.mxu0 %v1247
        %3056 = vmatmul.mubr.bf16.gmra.mrb[0].mxu0 %v1246
        %v3057 = vpop.f32.mrb[0].mxu0
        %v3058 = vadd.f32 %v2961, %v3057
        %v3059 = vpop.f32.mrb[0].mxu0
        %v3060 = vpop.f32.mrb[0].mxu0
        %v3061 = vadd.f32 %v2964, %v3060
        %v3062 = vpop.f32.mrb[0].mxu0
        %3063 = vmatprep.mubr.bf16.mxu0 %v1265
        %3064 = vmatmul.mubr.bf16.gmra.mrb[0].mxu0 %v1264
        %v3065 = vpop.f32.mrb[0].mxu0
        %v3066 = vadd.f32 %v2969, %v3065
        %v3067 = vpop.f32.mrb[0].mxu0
        %v3068 = vpop.f32.mrb[0].mxu0
        %v3069 = vadd.f32 %v2972, %v3068
        %v3070 = vpop.f32.mrb[0].mxu0
        %3071 = vmatprep.mubr.bf16.mxu0 %v1283
        %3072 = vmatmul.mubr.bf16.gmra.mrb[0].mxu0 %v1282
        %v3073 = vpop.f32.mrb[0].mxu0
        %v3074 = vadd.f32 %v2977, %v3073
        %v3075 = vpop.f32.mrb[0].mxu0
        %v3076 = vpop.f32.mrb[0].mxu0
        %v3077 = vadd.f32 %v2980, %v3076
        %v3078 = vpop.f32.mrb[0].mxu0
        %3079 = vmatprep.mubr.bf16.mxu0 %v1301
        %3080 = vmatmul.mubr.bf16.gmra.mrb[0].mxu0 %v1300
        %v3081 = vpop.f32.mrb[0].mxu0
        %v3082 = vadd.f32 %v2985, %v3081
        %v3083 = vpop.f32.mrb[0].mxu0
        %v3084 = vpop.f32.mrb[0].mxu0
        %v3085 = vadd.f32 %v2988, %v3084
        %v3086 = vpop.f32.mrb[0].mxu0
        %3087 = vdwg.mxu0
        %3088 = vmatprep.subr.bf16.mxu0 0
        %3089 = vmatpush1.bf16.msra.mxu0 %v2152
        %3090 = vmatprep.subr.bf16.mxu0 0
        %3091 = vmatpush1.bf16.msra.mxu0 %v2153
        %3092 = vmatprep.subr.bf16.mxu0 0
        %3093 = vmatpush1.bf16.msra.mxu0 %v2154
        %3094 = vmatprep.subr.bf16.mxu0 0
        %3095 = vmatpush1.bf16.msra.mxu0 %v2155
        %3096 = vmatprep.subr.bf16.mxu0 0
        %3097 = vmatpush1.bf16.msra.mxu0 %v2156
        %3098 = vmatprep.subr.bf16.mxu0 0
        %3099 = vmatpush1.bf16.msra.mxu0 %v2157
        %3100 = vmatprep.subr.bf16.mxu0 0
        %3101 = vmatpush1.bf16.msra.mxu0 %v2158
        %3102 = vmatprep.subr.bf16.mxu0 0
        %3103 = vmatpush1.bf16.msra.mxu0 %v2159
        %3104 = vmatprep.subr.bf16.mxu0 0
        %3105 = vmatpush1.bf16.msra.mxu0 %v2160
        %3106 = vmatprep.subr.bf16.mxu0 0
        %3107 = vmatpush1.bf16.msra.mxu0 %v2161
        %3108 = vmatprep.subr.bf16.mxu0 0
        %3109 = vmatpush1.bf16.msra.mxu0 %v2162
        %3110 = vmatprep.subr.bf16.mxu0 0
        %3111 = vmatpush1.bf16.msra.mxu0 %v2163
        %3112 = vmatprep.subr.bf16.mxu0 0
        %3113 = vmatpush1.bf16.msra.mxu0 %v2164
        %3114 = vmatprep.subr.bf16.mxu0 0
        %3115 = vmatpush1.bf16.msra.mxu0 %v2165
        %3116 = vmatprep.subr.bf16.mxu0 0
        %3117 = vmatpush1.bf16.msra.mxu0 %v2166
        %3118 = vmatprep.subr.bf16.mxu0 0
        %3119 = vmatpush1.bf16.msra.mxu0 %v2167
        %3120 = vmatprep.mubr.bf16.mxu0 %v1177
        %3121 = vmatmul.mubr.bf16.gmra.mrb[0].mxu0 %v1176
        %v3122 = vpop.f32.mrb[0].mxu0
        %v3123 = vadd.f32 %v3026, %v3122
        %v3124 = vpop.f32.mrb[0].mxu0
        %v3125 = vpop.f32.mrb[0].mxu0
        %v3126 = vadd.f32 %v3029, %v3125
        %v3127 = vpop.f32.mrb[0].mxu0
        %3128 = vmatprep.mubr.bf16.mxu0 %v1195
        %3129 = vmatmul.mubr.bf16.gmra.mrb[0].mxu0 %v1194
        %v3130 = vpop.f32.mrb[0].mxu0
        %v3131 = vadd.f32 %v3034, %v3130
        %v3132 = vpop.f32.mrb[0].mxu0
        %v3133 = vpop.f32.mrb[0].mxu0
        %v3134 = vadd.f32 %v3037, %v3133
        %v3135 = vpop.f32.mrb[0].mxu0
        %3136 = vmatprep.mubr.bf16.mxu0 %v1213
        %3137 = vmatmul.mubr.bf16.gmra.mrb[0].mxu0 %v1212
        %v3138 = vpop.f32.mrb[0].mxu0
        %v3139 = vadd.f32 %v3042, %v3138
        %v3140 = vpop.f32.mrb[0].mxu0
        %v3141 = vpop.f32.mrb[0].mxu0
        %v3142 = vadd.f32 %v3045, %v3141
        %v3143 = vpop.f32.mrb[0].mxu0
        %3144 = vmatprep.mubr.bf16.mxu0 %v1231
        %3145 = vmatmul.mubr.bf16.gmra.mrb[0].mxu0 %v1230
        %v3146 = vpop.f32.mrb[0].mxu0
        %v3147 = vadd.f32 %v3050, %v3146
        %v3148 = vpop.f32.mrb[0].mxu0
        %v3149 = vpop.f32.mrb[0].mxu0
        %v3150 = vadd.f32 %v3053, %v3149
        %v3151 = vpop.f32.mrb[0].mxu0
        %3152 = vmatprep.mubr.bf16.mxu0 %v1249
        %3153 = vmatmul.mubr.bf16.gmra.mrb[0].mxu0 %v1248
        %v3154 = vpop.f32.mrb[0].mxu0
        %v3155 = vadd.f32 %v3058, %v3154
        %v3156 = vpop.f32.mrb[0].mxu0
        %v3157 = vpop.f32.mrb[0].mxu0
        %v3158 = vadd.f32 %v3061, %v3157
        %v3159 = vpop.f32.mrb[0].mxu0
        %3160 = vmatprep.mubr.bf16.mxu0 %v1267
        %3161 = vmatmul.mubr.bf16.gmra.mrb[0].mxu0 %v1266
        %v3162 = vpop.f32.mrb[0].mxu0
        %v3163 = vadd.f32 %v3066, %v3162
        %v3164 = vpop.f32.mrb[0].mxu0
        %v3165 = vpop.f32.mrb[0].mxu0
        %v3166 = vadd.f32 %v3069, %v3165
        %v3167 = vpop.f32.mrb[0].mxu0
        %3168 = vmatprep.mubr.bf16.mxu0 %v1285
        %3169 = vmatmul.mubr.bf16.gmra.mrb[0].mxu0 %v1284
        %v3170 = vpop.f32.mrb[0].mxu0
        %v3171 = vadd.f32 %v3074, %v3170
        %v3172 = vpop.f32.mrb[0].mxu0
        %v3173 = vpop.f32.mrb[0].mxu0
        %v3174 = vadd.f32 %v3077, %v3173
        %v3175 = vpop.f32.mrb[0].mxu0
        %3176 = vmatprep.mubr.bf16.mxu0 %v1303
        %3177 = vmatmul.mubr.bf16.gmra.mrb[0].mxu0 %v1302
        %v3178 = vpop.f32.mrb[0].mxu0
        %v3179 = vadd.f32 %v3082, %v3178
        %v3180 = vpop.f32.mrb[0].mxu0
        %v3181 = vpop.f32.mrb[0].mxu0
        %v3182 = vadd.f32 %v3085, %v3181
        %v3183 = vpop.f32.mrb[0].mxu0
        %3184 = vdwg.mxu0
        %v3185 = vadd.f32 %v3123, %v3126
        %v3186 = vadd.f32 %v3185, %v3131
        %v3187 = vadd.f32 %v3186, %v3134
        %v3188 = vadd.f32 %v3187, %v3139
        %v3189 = vadd.f32 %v3188, %v3142
        %v3190 = vadd.f32 %v3189, %v3147
        %v3191 = vadd.f32 %v3190, %v3150
        %v3192 = vadd.f32 %v3191, %v3155
        %v3193 = vadd.f32 %v3192, %v3158
        %v3194 = vadd.f32 %v3193, %v3163
        %v3195 = vadd.f32 %v3194, %v3166
        %v3196 = vadd.f32 %v3195, %v3171
        %v3197 = vadd.f32 %v3196, %v3174
        %v3198 = vadd.f32 %v3197, %v3179
        %v3199 = vadd.f32 %v3198, %v3182
        %v3200 = vrot.slane %v3199, 4
        %v3201 = vadd.f32 %v3199, %v3200
        %v3202 = vrot.slane %v3201, 2
        %v3203 = vadd.f32 %v3201, %v3202
        %v3204 = vrot.slane %v3203, 1
        %v3205 = vadd.f32 %v3203, %v3204
        %v3206 = vmul.f32 %v3123, %v3123
        %v3207 = vmul.f32 %v3126, %v3126
        %v3208 = vmul.f32 %v3131, %v3131
        %v3209 = vmul.f32 %v3134, %v3134
        %v3210 = vmul.f32 %v3139, %v3139
        %v3211 = vmul.f32 %v3142, %v3142
        %v3212 = vmul.f32 %v3147, %v3147
        %v3213 = vmul.f32 %v3150, %v3150
        %v3214 = vmul.f32 %v3155, %v3155
        %v3215 = vmul.f32 %v3158, %v3158
        %v3216 = vmul.f32 %v3163, %v3163
        %v3217 = vmul.f32 %v3166, %v3166
        %v3218 = vmul.f32 %v3171, %v3171
        %v3219 = vmul.f32 %v3174, %v3174
        %v3220 = vmul.f32 %v3179, %v3179
        %v3221 = vmul.f32 %v3182, %v3182
        %v3222 = vadd.f32 %v3206, %v3207
        %v3223 = vadd.f32 %v3222, %v3208
        %v3224 = vadd.f32 %v3223, %v3209
        %v3225 = vadd.f32 %v3224, %v3210
        %v3226 = vadd.f32 %v3225, %v3211
        %v3227 = vadd.f32 %v3226, %v3212
        %v3228 = vadd.f32 %v3227, %v3213
        %v3229 = vadd.f32 %v3228, %v3214
        %v3230 = vadd.f32 %v3229, %v3215
        %v3231 = vadd.f32 %v3230, %v3216
        %v3232 = vadd.f32 %v3231, %v3217
        %v3233 = vadd.f32 %v3232, %v3218
        %v3234 = vadd.f32 %v3233, %v3219
        %v3235 = vadd.f32 %v3234, %v3220
        %v3236 = vadd.f32 %v3235, %v3221
        %v3237 = vrot.slane %v3236, 4
        %v3238 = vadd.f32 %v3236, %v3237
        %v3239 = vrot.slane %v3238, 2
        %v3240 = vadd.f32 %v3238, %v3239
        %v3241 = vrot.slane %v3240, 1
        %v3242 = vadd.f32 %v3240, %v3241
        %v3243 = vmul.f32 %v3205, 0.0078125
        %v3244 = vmul.f32 %v3242, 0.0078125
        %v3245 = vmul.f32 %v3243, %v3243
        %v3246 = vsub.f32 %v3244, %v3245
        %v3247 = vld [vmem:[%s254] sm:$0x1]
        %v3248 = vadd.f32 %v3246, 1e-05
        %v3249 = vrsqrt.pop %v3248
        %v3250 = vmul.f32 %v3247, %v3249
        %v3251 = vld [vmem:[%s262] sm:$0x1]
        %v3252 = vmul.f32 %v3243, %v3250
        %v3253 = vsub.f32 %v3251, %v3252
        %v3255 = vlaneseq
        %v3256 = vshrl.u32 %v3255, 7
        %v3257 = vsub.s32 0, %v3256
        %v3258 = vrot.slane %v3250, %v3257
        %v3260 = vmul.f32 %v3123, %v3258
        %v3261 = vmul.f32 %v3126, %v3258
        %v3262 = vmul.f32 %v3131, %v3258
        %v3263 = vmul.f32 %v3134, %v3258
        %v3264 = vmul.f32 %v3139, %v3258
        %v3265 = vmul.f32 %v3142, %v3258
        %v3266 = vmul.f32 %v3147, %v3258
        %v3267 = vmul.f32 %v3150, %v3258
        %v3268 = vmul.f32 %v3155, %v3258
        %v3269 = vmul.f32 %v3158, %v3258
        %v3270 = vmul.f32 %v3163, %v3258
        %v3271 = vmul.f32 %v3166, %v3258
        %v3272 = vmul.f32 %v3171, %v3258
        %v3273 = vmul.f32 %v3174, %v3258
        %v3274 = vmul.f32 %v3179, %v3258
        %v3275 = vmul.f32 %v3182, %v3258
        %v3277 = vlaneseq
        %v3278 = vshrl.u32 %v3277, 7
        %v3279 = vsub.s32 0, %v3278
        %v3280 = vrot.slane %v3253, %v3279
        %v3282 = vadd.f32 %v3260, %v3280
        %v3283 = vadd.f32 %v3261, %v3280
        %v3284 = vadd.f32 %v3262, %v3280
        %v3285 = vadd.f32 %v3263, %v3280
        %v3286 = vadd.f32 %v3264, %v3280
        %v3287 = vadd.f32 %v3265, %v3280
        %v3288 = vadd.f32 %v3266, %v3280
        %v3289 = vadd.f32 %v3267, %v3280
        %v3290 = vadd.f32 %v3268, %v3280
        %v3291 = vadd.f32 %v3269, %v3280
        %v3292 = vadd.f32 %v3270, %v3280
        %v3293 = vadd.f32 %v3271, %v3280
        %v3294 = vadd.f32 %v3272, %v3280
        %v3295 = vadd.f32 %v3273, %v3280
        %v3296 = vadd.f32 %v3274, %v3280
        %v3297 = vadd.f32 %v3275, %v3280
        %v3298 = vmax.f32 %v3282, 0.0
        %v3299 = vmax.f32 %v3283, 0.0
        %v3300 = vmax.f32 %v3284, 0.0
        %v3301 = vmax.f32 %v3285, 0.0
        %v3302 = vmax.f32 %v3286, 0.0
        %v3303 = vmax.f32 %v3287, 0.0
        %v3304 = vmax.f32 %v3288, 0.0
        %v3305 = vmax.f32 %v3289, 0.0
        %v3306 = vmax.f32 %v3290, 0.0
        %v3307 = vmax.f32 %v3291, 0.0
        %v3308 = vmax.f32 %v3292, 0.0
        %v3309 = vmax.f32 %v3293, 0.0
        %v3310 = vmax.f32 %v3294, 0.0
        %v3311 = vmax.f32 %v3295, 0.0
        %v3312 = vmax.f32 %v3296, 0.0
        %v3313 = vmax.f32 %v3297, 0.0
        %3314 = vst [vmem:[%s294] sm:$0xff] %v3298
        %3315 = vst [vmem:[%s294 + $0x8] sm:$0xff] %v3299
        %3316 = vst [vmem:[%s294 + $0x10] sm:$0xff] %v3300
        %3317 = vst [vmem:[%s294 + $0x18] sm:$0xff] %v3301
        %3318 = vst [vmem:[%s294 + $0x20] sm:$0xff] %v3302
        %3319 = vst [vmem:[%s294 + $0x28] sm:$0xff] %v3303
        %3320 = vst [vmem:[%s294 + $0x30] sm:$0xff] %v3304
        %3321 = vst [vmem:[%s294 + $0x38] sm:$0xff] %v3305
        %3322 = vst [vmem:[%s294 + $0x40] sm:$0xff] %v3306
        %3323 = vst [vmem:[%s294 + $0x48] sm:$0xff] %v3307
        %3324 = vst [vmem:[%s294 + $0x50] sm:$0xff] %v3308
        %3325 = vst [vmem:[%s294 + $0x58] sm:$0xff] %v3309
        %3326 = vst [vmem:[%s294 + $0x60] sm:$0xff] %v3310
        %3327 = vst [vmem:[%s294 + $0x68] sm:$0xff] %v3311
        %3328 = vst [vmem:[%s294 + $0x70] sm:$0xff] %v3312
        %3329 = vst [vmem:[%s294 + $0x78] sm:$0xff] %v3313
        %s3330 = sand.u32 %s132, 1
        %s3331 = scalar_lea.sflag [#allocation4], %s3330
        %s3332 = sand.u32 %s132, 1
        %s3333 = smul.addr %s3332, 128
        %s3334 = scalar_lea.vmem [#allocation10], %s3333
        // Predicated region
        $region53: #{tpu_custom_call.1} parent=35 // pred_check
          %p3335 = pneg %p142
        $region54: #{tpu_custom_call.1} parent=35 // pred_check_branch
          %3337 = sbr.rel (%p3335) target = $region56
        $region55: #{tpu_custom_call.1} parent=35 // pred_region
          %s3339 = ssub.s32 2048, 2048
          %3340 = vsyncadd %s3331, %s3339
          %s3341 = smul.addr %s25, 128
          %s3342 = scalar_lea.hbm %s4, %s3341
          %s3343 = sshll.u32 %s3334, 4
          %s3344 = int_to_ptr.vmem [resolvable:$true] %s3343
          %3349 = dma.vmem_to_hbm [thread:$0]  %s3344, 2048, %s3342, %s3331, 128, 256, 8
        $region56: #{tpu_custom_call.1} parent=35 // pred_fallthru
          _
      $region36: #{tpu_custom_call.1} parent=5 // pred_fallthru
        _
      %p3350 = scmp.le.s32.totalorder 2, %s20
      // Predicated region
      $region57: #{tpu_custom_call.1} parent=5 // pred_check
        %p3351 = pneg %p3350
      $region58: #{tpu_custom_call.1} parent=5 // pred_check_branch
        %3353 = sbr.rel (%p3351) target = $region60
      $region59: #{tpu_custom_call.1} parent=5 // pred_region
        %s3354 = ssub.s32 %s20, 2
        // Predicated region
        $region61: #{tpu_custom_call.1} parent=59 // pred_check
          %p3355 = pneg %p148
        $region62: #{tpu_custom_call.1} parent=59 // pred_check_branch
          %3357 = sbr.rel (%p3355) target = $region64
        $region63: #{tpu_custom_call.1} parent=59 // pred_region
          %s3358 = sand.u32 %s133, 1
          %s3359 = scalar_lea.sflag [#allocation4], %s3358
          %s3360 = sand.u32 %s133, 1
          %s3361 = smul.addr %s3360, 128
          %s3362 = scalar_lea.vmem [#allocation10], %s3361
          %3363 = dma.done %s3359, 2048
        $region64: #{tpu_custom_call.1} parent=59 // pred_fallthru
          _
      $region60: #{tpu_custom_call.1} parent=5 // pred_fallthru
        _
    $region6: #{tpu_custom_call.1} parent=1 // loop_footer
      %s24 = sadd.s32 1, %s20
    $region7: #{tpu_custom_call.1} parent=1 // loop_footer_branch
      %19 = sbr.rel target = $region3
    $region8: #{tpu_custom_call.1} parent=1 // loop_exit
      _
    %3364 = vsyncpa [#allocation3], 1
    %s3365 = scalar_lea.sflag [#allocation3], 1
    %3366 = vsyncpa %s3365, 1
    %3367 = vsyncpa [#allocation6], 1
    %s3368 = scalar_lea.sflag [#allocation6], 1
    %3369 = vsyncpa %s3368, 1
    %3370 = vsyncpa [#allocation9], 1
    %s3371 = scalar_lea.sflag [#allocation9], 1
    %3372 = vsyncpa %s3371, 1
    %3373 = vsyncpa [#allocation4], 1
    %s3374 = scalar_lea.sflag [#allocation4], 1
    %3375 = vsyncpa %s3374, 1

</llo_original>
